<compile_context>
chip_gen: v5e
topology: v5e:2x2
jax: 0.10.0
libtpu: 0.0.40
codegen_flags: <defaults>
</compile_context>

<pallas_src>
import jax
import jax.numpy as jnp
from jax.experimental import pallas as pl
from jax.experimental.pallas import tpu as pltpu


def _rcu_kernel(x_top_ref, x_mid_ref, x_bot_ref, w1_ref, b1_ref, w2_ref, b2_ref,
                out_ref, a_ref, y1_ref):
    # x_top_ref: (1, 2, W, C)   image rows r0-2 .. r0-1 (clamped; zero-masked at the top)
    # x_mid_ref: (1, TH, W, C)  image rows r0   .. r0+TH-1 (also the residual term)
    # x_bot_ref: (1, 2, W, C)   image rows r0+TH .. r0+TH+1 (clamped; zero-masked at bottom)
    # w*_ref   : (3, 3*C, C)    per row-tap weights, 3 column taps folded into K (compute dtype)
    # b*_ref   : (1, C) f32
    # out_ref  : (1, TH, W, C)
    # a_ref    : VMEM (TH+4, W, C) compute dtype -- relu(x) with zero halo rows
    # y1_ref   : VMEM (TH+2, W, C) compute dtype -- relu(conv1) with SAME-padding zero rows
    i = pl.program_id(0)
    nb = pl.num_programs(0)
    _, TH, W, C = out_ref.shape
    cd = a_ref.dtype

    x_mid = x_mid_ref[0]                                          # (TH, W, C), input dtype

    # relu(x), cast once to the MXU operand dtype, written straight into the halo'd
    # activation scratch (no separate axis-0 concatenate).
    a_ref[2:TH + 2] = jnp.maximum(x_mid, 0.0).astype(cd)
    a_ref[0:2] = jnp.where(i > 0, jnp.maximum(x_top_ref[0], 0.0), 0.0).astype(cd)
    a_ref[TH + 2:TH + 4] = jnp.where(i < nb - 1,
                                     jnp.maximum(x_bot_ref[0], 0.0), 0.0).astype(cd)

    def shifted_cat(t):
        # (R, W, C) -> (R, W, 3C): columns [w-1, w, w+1] with zeros at the image edges.
        # TODO(synk): move the +/-1 column shifts onto the XLU via pltpu.roll + edge mask
        # (frees vst slots, esp. on v5e); slice+concat kept here as the proven-to-lower path.
        r = t.shape[0]
        zcol = jnp.zeros((r, 1, C), t.dtype)
        s_l = jnp.concatenate([zcol, t[:, :W - 1, :]], axis=1)    # kw = 0 tap
        s_r = jnp.concatenate([t[:, 1:, :], zcol], axis=1)        # kw = 2 tap
        return jnp.concatenate([s_l, t, s_r], axis=-1)

    def conv3x3(act, w_ref, rows_out):
        # act: (rows_out + 2, W, C) compute dtype -> (rows_out, W, C) f32 (bias excluded).
        cat = shifted_cat(act)                                    # (rows_out + 2, W, 3C)
        acc = None
        for kh in range(3):                                       # 3 row taps, K = 3*C each
            patch = cat[kh:kh + rows_out].reshape(rows_out * W, 3 * C)
            p = jnp.dot(patch, w_ref[kh], preferred_element_type=jnp.float32)
            acc = p if acc is None else acc + p
        return acc.reshape(rows_out, W, C)

    # conv1 (+bias, +relu) for image rows r0-1 .. r0+TH (one halo row each side for conv2).
    y1_ref[...] = jnp.maximum(conv3x3(a_ref[...], w1_ref, TH + 2) + b1_ref[0],
                              0.0).astype(cd)

    # Rows falling outside the image are conv2's SAME zero padding: zero them only on the
    # boundary blocks (interior blocks skip this entirely).
    @pl.when(i == 0)
    def _():
        y1_ref[0:1] = jnp.zeros((1, W, C), cd)

    @pl.when(i == nb - 1)
    def _():
        y1_ref[TH + 1:TH + 2] = jnp.zeros((1, W, C), cd)

    # conv2 (+bias) for image rows r0 .. r0+TH-1, then the residual with the raw input.
    y2 = conv3x3(y1_ref[...], w2_ref, TH) + b2_ref[0]
    out_ref[0] = (y2 + x_mid).astype(out_ref.dtype)


def _vmem_budget_bytes():
    """~75% of physical VMEM: ~48 MiB on v7x (64 MiB), ~96 MiB on v5e/v6e (128 MiB)."""
    cap = 64 * 2**20                       # conservative fallback (v7x-sized)
    try:
        info = pltpu.get_tpu_info()
        cap = int(getattr(info, "vmem_capacity_bytes", cap)) or cap
    except Exception:
        pass
    return (3 * cap) // 4


def _pick_block_h(H, W, C, N, budget_elems):
    """Largest even divisor of H whose (block_h+4, W, C) tile fits the element budget,
    preferring >= 2 total grid programs so both v7x TensorCores get work."""
    even_divs = [d for d in range(2, H + 1) if H % d == 0 and d % 2 == 0]
    if not even_divs:
        return H
    fitting = [d for d in even_divs if (d + 4) * W * C <= budget_elems]
    cand = max(fitting) if fitting else min(even_divs)
    if N * (H // cand) < 2:                # keep both v7x TensorCores busy when possible
        smaller = [d for d in (fitting or even_divs) if H // d >= 2]
        if smaller:
            cand = max(smaller)
    return cand


def residual_conv_unit_nhwc(x, w1, b1, w2, b2, *, block_h=None,
                            compute_dtype=jnp.bfloat16):
    """x: (N, H, W, C) channels-last. w*: (Cout, Cin, 3, 3) torch-style. b*: (C,)."""
    N, H, W, C = x.shape
    assert H >= 2 and W >= 2, "kernel assumes at least a 2x2 spatial extent"

    itemsize = jnp.dtype(compute_dtype).itemsize
    vmem_limit = int(_vmem_budget_bytes())
    weight_bytes = 2 * 2 * 3 * (3 * C) * C * itemsize       # 2 convs, ~double-buffered
    # ~16 live tile-sized f32-equivalent buffers (in/out double-buffers, cat, accumulators).
    budget_elems = max((vmem_limit - weight_bytes) // (16 * 4), 16 * 1024)

    if block_h is None:
        block_h = _pick_block_h(H, W, C, N, budget_elems)
    if H % block_h != 0 or (H // block_h > 1 and block_h % 2 != 0):
        block_h = H                       # safe fallback: one block per image
    n_blocks = H // block_h
    th2 = max(block_h // 2, 1)            # halo inputs use a 2-row blocking of the H axis
    last_halo_blk = max(H // 2 - 1, 0)

    # Torch (Cout, Cin, 3, 3) -> (kh, kw*Cin, Cout): the three column taps folded into the
    # contraction dim, matching the kernel's [w-1, w, w+1] channel concatenation.
    def fold(w):
        return jnp.transpose(w, (2, 3, 1, 0)).reshape(3, 3 * C, C).astype(compute_dtype)

    w1f, w2f = fold(w1), fold(w2)
    b1r = b1.reshape(1, C).astype(jnp.float32)
    b2r = b2.reshape(1, C).astype(jnp.float32)

    return pl.pallas_call(
        _rcu_kernel,
        out_shape=jax.ShapeDtypeStruct((N, H, W, C), x.dtype),
        grid_spec=pltpu.PrefetchScalarGridSpec(
            num_scalar_prefetch=0,
            grid=(n_blocks, N),           # spatial axis leading so both v7x TCs get work
            in_specs=[
                # 2-row top halo (image rows r0-2 .. r0-1), clamped at the image top
                pl.BlockSpec((1, 2, W, C),
                             lambda i, n: (n, jnp.maximum(i * th2 - 1, 0), 0, 0)),
                # this block's own rows r0 .. r0+TH-1 (also the residual term)
                pl.BlockSpec((1, block_h, W, C), lambda i, n: (n, i, 0, 0)),
                # 2-row bottom halo (image rows r0+TH .. r0+TH+1), clamped at the bottom
                pl.BlockSpec((1, 2, W, C),
                             lambda i, n: (n, jnp.minimum((i + 1) * th2, last_halo_blk), 0, 0)),
                pl.BlockSpec((3, 3 * C, C), lambda i, n: (0, 0, 0)),
                pl.BlockSpec((1, C), lambda i, n: (0, 0)),
                pl.BlockSpec((3, 3 * C, C), lambda i, n: (0, 0, 0)),
                pl.BlockSpec((1, C), lambda i, n: (0, 0)),
            ],
            out_specs=pl.BlockSpec((1, block_h, W, C), lambda i, n: (n, i, 0, 0)),
            scratch_shapes=[
                pltpu.VMEM((block_h + 4, W, C), compute_dtype),   # relu(x) with halo rows
                pltpu.VMEM((block_h + 2, W, C), compute_dtype),   # relu(conv1) with halo rows
            ],
        ),
        compiler_params=pltpu.CompilerParams(
            dimension_semantics=("parallel", "parallel"),
            vmem_limit_bytes=vmem_limit),
    )(x, x, x, w1f, b1r, w2f, b2r)


def residual_conv_unit(x_nchw, w1, b1, w2, b2, **kwargs):
    """NCHW convenience wrapper matching the PyTorch module's layout."""
    # TODO(synk): keep the surrounding model NHWC so these two full-array HBM transposes
    # (pure relayout traffic, can exceed the kernel's own HBM cost at small C) disappear.
    x = jnp.transpose(x_nchw, (0, 2, 3, 1))
    y = residual_conv_unit_nhwc(x, w1, b1, w2, b2, **kwargs)
    return jnp.transpose(y, (0, 3, 1, 2))


def _reference(x, w1, b1, w2, b2):
    """Pure-JAX NCHW reference mirroring the PyTorch forward."""
    def conv(inp, w, b):
        y = jax.lax.conv_general_dilated(
            inp, w, window_strides=(1, 1), padding="SAME",
            dimension_numbers=("NCHW", "OIHW", "NCHW"))
        return y + b[None, :, None, None]

    out = jax.nn.relu(x)
    out = conv(out, w1, b1)
    out = jax.nn.relu(out)
    out = conv(out, w2, b2)
    return out + x


if __name__ == "__main__":
    N, C, H, W = 2, 4, 16, 16
    key = jax.random.PRNGKey(0)
    kx, k1, k2, k3, k4 = jax.random.split(key, 5)

    x = jax.random.normal(kx, (N, C, H, W), dtype=jnp.float32)
    # Deterministic synthetic parameters (shapes match nn.Conv2d(C, C, 3, padding=1)).
    w1 = jax.random.normal(k1, (C, C, 3, 3), dtype=jnp.float32) * 0.1
    b1 = jax.random.normal(k2, (C,), dtype=jnp.float32) * 0.1
    w2 = jax.random.normal(k3, (C, C, 3, 3), dtype=jnp.float32) * 0.1
    b2 = jax.random.normal(k4, (C,), dtype=jnp.float32) * 0.1

    ref = _reference(x, w1, b1, w2, b2)

    # f32-operand path, multi-row-block tiling: exercises first/interior/last blocks,
    # the halo masking, and the pl.when boundary zeroing, with a tight tolerance.
    out_f32 = jax.block_until_ready(
        residual_conv_unit(x, w1, b1, w2, b2, block_h=4, compute_dtype=jnp.float32))
    assert out_f32.shape == ref.shape == (N, C, H, W)
    assert jnp.allclose(out_f32, ref, atol=2e-4, rtol=2e-4), "f32 tiled path mismatch"

    # f32-operand path, auto-picked tiling (single block at this tiny shape).
    out_auto = jax.block_until_ready(
        residual_conv_unit(x, w1, b1, w2, b2, compute_dtype=jnp.float32))
    assert jnp.allclose(out_auto, ref, atol=2e-4, rtol=2e-4), "f32 auto path mismatch"

    # Default bf16-operand path (f32 accumulation): looser tolerance for bf16 rounding.
    out_bf16 = jax.block_until_ready(residual_conv_unit(x, w1, b1, w2, b2, block_h=4))
    max_err = jnp.max(jnp.abs(out_bf16 - ref))
    assert max_err < 1e-1, f"bf16 path error too large: {max_err}"

    print("KERNEL_OK")
</pallas_src>

<mosaic_0001>
module attributes {stable_mosaic.version = 11 : i64} {
  func.func @_rcu_kernel(%arg0: i32, %arg1: i32, %arg2: memref<1x2x16x4xf32, #tpu.memory_space<vmem>>, %arg3: memref<1x4x16x4xf32, #tpu.memory_space<vmem>>, %arg4: memref<1x2x16x4xf32, #tpu.memory_space<vmem>>, %arg5: memref<3x12x4xf32, #tpu.memory_space<vmem>>, %arg6: memref<1x4xf32, #tpu.memory_space<vmem>>, %arg7: memref<3x12x4xf32, #tpu.memory_space<vmem>>, %arg8: memref<1x4xf32, #tpu.memory_space<vmem>>, %arg9: memref<1x4x16x4xf32, #tpu.memory_space<vmem>>, %arg10: memref<8x16x4xf32, #tpu.memory_space<vmem>>, %arg11: memref<6x16x4xf32, #tpu.memory_space<vmem>>) attributes {dimension_semantics = [#tpu.dimension_semantics<parallel>, #tpu.dimension_semantics<parallel>], iteration_bounds = array<i64: 4, 2>, scalar_prefetch = 0 : i64, scratch_operands = 2 : i64, tpu.core_type = #tpu.core_type<tc>, window_params = [{transform_indices = @transform_0, window_bounds = array<i64: 1, 2, 16, 4>}, {transform_indices = @transform_1, window_bounds = array<i64: 1, 4, 16, 4>}, {transform_indices = @transform_2, window_bounds = array<i64: 1, 2, 16, 4>}, {pipeline_mode = #tpu.pipeline_mode<synchronous>, transform_indices = @transform_3, window_bounds = array<i64: 3, 12, 4>}, {pipeline_mode = #tpu.pipeline_mode<synchronous>, transform_indices = @transform_4, window_bounds = array<i64: 1, 4>}, {pipeline_mode = #tpu.pipeline_mode<synchronous>, transform_indices = @transform_5, window_bounds = array<i64: 3, 12, 4>}, {pipeline_mode = #tpu.pipeline_mode<synchronous>, transform_indices = @transform_6, window_bounds = array<i64: 1, 4>}, {transform_indices = @transform_7, window_bounds = array<i64: 1, 4, 16, 4>}]} {
    %c0 = arith.constant 0 : index
    %c0_0 = arith.constant 0 : index
    %c0_1 = arith.constant 0 : index
    %c0_2 = arith.constant 0 : index
    %0 = vector.load %arg3[%c0, %c0_0, %c0_1, %c0_2] : memref<1x4x16x4xf32, #tpu.memory_space<vmem>>, vector<1x4x16x4xf32>
    %1 = vector.shape_cast %0 : vector<1x4x16x4xf32> to vector<4x16x4xf32>
    %cst = arith.constant 0.000000e+00 : f32
    %2 = vector.broadcast %cst : f32 to vector<4x16x4xf32>
    %3 = arith.maximumf %1, %2 : vector<4x16x4xf32>
    %c2 = arith.constant 2 : index
    %c0_3 = arith.constant 0 : index
    %c0_4 = arith.constant 0 : index
    %4 = vector.load %arg10[%c2, %c0_3, %c0_4] : memref<8x16x4xf32, #tpu.memory_space<vmem>>, vector<4x16x4xf32>
    tpu.vector_store %arg10[%c2, %c0_3, %c0_4], %3 {strides = array<i32>} : memref<8x16x4xf32, #tpu.memory_space<vmem>>, vector<4x16x4xf32>,
    %c0_i32 = arith.constant 0 : i32
    %5 = arith.cmpi sgt, %arg0, %c0_i32 : i32
    %c0_5 = arith.constant 0 : index
    %c0_6 = arith.constant 0 : index
    %c0_7 = arith.constant 0 : index
    %c0_8 = arith.constant 0 : index
    %6 = vector.load %arg2[%c0_5, %c0_6, %c0_7, %c0_8] : memref<1x2x16x4xf32, #tpu.memory_space<vmem>>, vector<1x2x16x4xf32>
    %7 = vector.shape_cast %6 : vector<1x2x16x4xf32> to vector<2x16x4xf32>
    %cst_9 = arith.constant 0.000000e+00 : f32
    %8 = vector.broadcast %cst_9 : f32 to vector<2x16x4xf32>
    %9 = arith.maximumf %7, %8 : vector<2x16x4xf32>
    %cst_10 = arith.constant 0.000000e+00 : f32
    %10 = vector.broadcast %cst_10 : f32 to vector<2x16x4xf32>
    %11 = arith.select %5, %9, %10 : vector<2x16x4xf32>
    %c0_11 = arith.constant 0 : index
    %c0_12 = arith.constant 0 : index
    %c0_13 = arith.constant 0 : index
    %12 = vector.load %arg10[%c0_11, %c0_12, %c0_13] : memref<8x16x4xf32, #tpu.memory_space<vmem>>, vector<2x16x4xf32>
    tpu.vector_store %arg10[%c0_11, %c0_12, %c0_13], %11 {strides = array<i32>} : memref<8x16x4xf32, #tpu.memory_space<vmem>>, vector<2x16x4xf32>,
    %c3_i32 = arith.constant 3 : i32
    %13 = arith.cmpi slt, %arg0, %c3_i32 : i32
    %c0_14 = arith.constant 0 : index
    %c0_15 = arith.constant 0 : index
    %c0_16 = arith.constant 0 : index
    %c0_17 = arith.constant 0 : index
    %14 = vector.load %arg4[%c0_14, %c0_15, %c0_16, %c0_17] : memref<1x2x16x4xf32, #tpu.memory_space<vmem>>, vector<1x2x16x4xf32>
    %15 = vector.shape_cast %14 : vector<1x2x16x4xf32> to vector<2x16x4xf32>
    %cst_18 = arith.constant 0.000000e+00 : f32
    %16 = vector.broadcast %cst_18 : f32 to vector<2x16x4xf32>
    %17 = arith.maximumf %15, %16 : vector<2x16x4xf32>
    %cst_19 = arith.constant 0.000000e+00 : f32
    %18 = vector.broadcast %cst_19 : f32 to vector<2x16x4xf32>
    %19 = arith.select %13, %17, %18 : vector<2x16x4xf32>
    %c6 = arith.constant 6 : index
    %c0_20 = arith.constant 0 : index
    %c0_21 = arith.constant 0 : index
    %20 = vector.load %arg10[%c6, %c0_20, %c0_21] : memref<8x16x4xf32, #tpu.memory_space<vmem>>, vector<2x16x4xf32>
    tpu.vector_store %arg10[%c6, %c0_20, %c0_21], %19 {strides = array<i32>} : memref<8x16x4xf32, #tpu.memory_space<vmem>>, vector<2x16x4xf32>,
    %c0_22 = arith.constant 0 : index
    %c0_23 = arith.constant 0 : index
    %c0_24 = arith.constant 0 : index
    %21 = vector.load %arg10[%c0_22, %c0_23, %c0_24] : memref<8x16x4xf32, #tpu.memory_space<vmem>>, vector<8x16x4xf32>
    %cst_25 = arith.constant 0.000000e+00 : f32
    %22 = vector.broadcast %cst_25 : f32 to vector<8x1x4xf32>
    %23 = vector.extract_strided_slice %21 {offsets = [0, 0, 0], sizes = [8, 15, 4], strides = [1, 1, 1]} : vector<8x16x4xf32> to vector<8x15x4xf32>
    %24 = tpu.concatenate %22, %23 in 1 : vector<8x1x4xf32>, vector<8x15x4xf32> -> vector<8x16x4xf32>
    %25 = vector.extract_strided_slice %21 {offsets = [0, 1, 0], sizes = [8, 15, 4], strides = [1, 1, 1]} : vector<8x16x4xf32> to vector<8x15x4xf32>
    %26 = tpu.concatenate %25, %22 in 1 : vector<8x15x4xf32>, vector<8x1x4xf32> -> vector<8x16x4xf32>
    %27 = tpu.concatenate %24, %21, %26 in 2 : vector<8x16x4xf32>, vector<8x16x4xf32>, vector<8x16x4xf32> -> vector<8x16x12xf32>
    %28 = vector.extract_strided_slice %27 {offsets = [0, 0, 0], sizes = [6, 16, 12], strides = [1, 1, 1]} : vector<8x16x12xf32> to vector<6x16x12xf32>
    %29 = vector.shape_cast %28 : vector<6x16x12xf32> to vector<96x12xf32>
    %c0_26 = arith.constant 0 : index
    %c0_27 = arith.constant 0 : index
    %c0_28 = arith.constant 0 : index
    %30 = vector.load %arg5[%c0_26, %c0_27, %c0_28] : memref<3x12x4xf32, #tpu.memory_space<vmem>>, vector<1x12x4xf32>
    %31 = vector.shape_cast %30 : vector<1x12x4xf32> to vector<12x4xf32>
    %cst_29 = arith.constant dense<0.000000e+00> : vector<96x4xf32>
    %32 = tpu.matmul %29, %31, %cst_29 {dimension_numbers = #tpu.dot_dimension_numbers<[1], [0], [0], [1], [0, 0, 1, 1], [], []>} : vector<96x12xf32>, vector<12x4xf32>, vector<96x4xf32> -> vector<96x4xf32>
    %33 = vector.extract_strided_slice %27 {offsets = [1, 0, 0], sizes = [6, 16, 12], strides = [1, 1, 1]} : vector<8x16x12xf32> to vector<6x16x12xf32>
    %34 = vector.shape_cast %33 : vector<6x16x12xf32> to vector<96x12xf32>
    %c1 = arith.constant 1 : index
    %c0_30 = arith.constant 0 : index
    %c0_31 = arith.constant 0 : index
    %35 = vector.load %arg5[%c1, %c0_30, %c0_31] : memref<3x12x4xf32, #tpu.memory_space<vmem>>, vector<1x12x4xf32>
    %36 = vector.shape_cast %35 : vector<1x12x4xf32> to vector<12x4xf32>
    %cst_32 = arith.constant dense<0.000000e+00> : vector<96x4xf32>
    %37 = tpu.matmul %34, %36, %cst_32 {dimension_numbers = #tpu.dot_dimension_numbers<[1], [0], [0], [1], [0, 0, 1, 1], [], []>} : vector<96x12xf32>, vector<12x4xf32>, vector<96x4xf32> -> vector<96x4xf32>
    %38 = arith.addf %32, %37 : vector<96x4xf32>
    %39 = vector.extract_strided_slice %27 {offsets = [2, 0, 0], sizes = [6, 16, 12], strides = [1, 1, 1]} : vector<8x16x12xf32> to vector<6x16x12xf32>
    %40 = vector.shape_cast %39 : vector<6x16x12xf32> to vector<96x12xf32>
    %c2_33 = arith.constant 2 : index
    %c0_34 = arith.constant 0 : index
    %c0_35 = arith.constant 0 : index
    %41 = vector.load %arg5[%c2_33, %c0_34, %c0_35] : memref<3x12x4xf32, #tpu.memory_space<vmem>>, vector<1x12x4xf32>
    %42 = vector.shape_cast %41 : vector<1x12x4xf32> to vector<12x4xf32>
    %cst_36 = arith.constant dense<0.000000e+00> : vector<96x4xf32>
    %43 = tpu.matmul %40, %42, %cst_36 {dimension_numbers = #tpu.dot_dimension_numbers<[1], [0], [0], [1], [0, 0, 1, 1], [], []>} : vector<96x12xf32>, vector<12x4xf32>, vector<96x4xf32> -> vector<96x4xf32>
    %44 = arith.addf %38, %43 : vector<96x4xf32>
    %45 = vector.shape_cast %44 : vector<96x4xf32> to vector<6x16x4xf32>
    %c0_37 = arith.constant 0 : index
    %c0_38 = arith.constant 0 : index
    %46 = vector.load %arg6[%c0_37, %c0_38] : memref<1x4xf32, #tpu.memory_space<vmem>>, vector<1x4xf32>
    %47 = vector.shape_cast %46 : vector<1x4xf32> to vector<4xf32>
    %48 = vector.shape_cast %47 : vector<4xf32> to vector<1x1x4xf32>
    %49 = vector.broadcast %48 : vector<1x1x4xf32> to vector<6x16x4xf32>
    %50 = arith.addf %45, %49 : vector<6x16x4xf32>
    %cst_39 = arith.constant 0.000000e+00 : f32
    %51 = vector.broadcast %cst_39 : f32 to vector<6x16x4xf32>
    %52 = arith.maximumf %50, %51 : vector<6x16x4xf32>
    %c0_40 = arith.constant 0 : index
    %c0_41 = arith.constant 0 : index
    %c0_42 = arith.constant 0 : index
    %53 = vector.load %arg11[%c0_40, %c0_41, %c0_42] : memref<6x16x4xf32, #tpu.memory_space<vmem>>, vector<6x16x4xf32>
    tpu.vector_store %arg11[%c0_40, %c0_41, %c0_42], %52 {strides = array<i32>} : memref<6x16x4xf32, #tpu.memory_space<vmem>>, vector<6x16x4xf32>,
    %c0_i32_43 = arith.constant 0 : i32
    %54 = arith.cmpi eq, %arg0, %c0_i32_43 : i32
    %55 = arith.extui %54 : i1 to i32
    %c0_i32_44 = arith.constant 0 : i32
    %56 = arith.cmpi ne, %55, %c0_i32_44 : i32
    scf.if %56 {
      %cst_69 = arith.constant 0.000000e+00 : f32
      %94 = vector.broadcast %cst_69 : f32 to vector<1x16x4xf32>
      %c0_70 = arith.constant 0 : index
      %c0_71 = arith.constant 0 : index
      %c0_72 = arith.constant 0 : index
      %95 = vector.load %arg11[%c0_70, %c0_71, %c0_72] : memref<6x16x4xf32, #tpu.memory_space<vmem>>, vector<1x16x4xf32>
      tpu.vector_store %arg11[%c0_70, %c0_71, %c0_72], %94 {strides = array<i32>} : memref<6x16x4xf32, #tpu.memory_space<vmem>>, vector<1x16x4xf32>,
    } else {
    }
    %c3_i32_45 = arith.constant 3 : i32
    %57 = arith.cmpi eq, %arg0, %c3_i32_45 : i32
    %58 = arith.extui %57 : i1 to i32
    %c0_i32_46 = arith.constant 0 : i32
    %59 = arith.cmpi ne, %58, %c0_i32_46 : i32
    scf.if %59 {
      %cst_69 = arith.constant 0.000000e+00 : f32
      %94 = vector.broadcast %cst_69 : f32 to vector<1x16x4xf32>
      %c5 = arith.constant 5 : index
      %c0_70 = arith.constant 0 : index
      %c0_71 = arith.constant 0 : index
      %95 = vector.load %arg11[%c5, %c0_70, %c0_71] : memref<6x16x4xf32, #tpu.memory_space<vmem>>, vector<1x16x4xf32>
      tpu.vector_store %arg11[%c5, %c0_70, %c0_71], %94 {strides = array<i32>} : memref<6x16x4xf32, #tpu.memory_space<vmem>>, vector<1x16x4xf32>,
    } else {
    }
    %c0_47 = arith.constant 0 : index
    %c0_48 = arith.constant 0 : index
    %c0_49 = arith.constant 0 : index
    %60 = vector.load %arg11[%c0_47, %c0_48, %c0_49] : memref<6x16x4xf32, #tpu.memory_space<vmem>>, vector<6x16x4xf32>
    %cst_50 = arith.constant 0.000000e+00 : f32
    %61 = vector.broadcast %cst_50 : f32 to vector<6x1x4xf32>
    %62 = vector.extract_strided_slice %60 {offsets = [0, 0, 0], sizes = [6, 15, 4], strides = [1, 1, 1]} : vector<6x16x4xf32> to vector<6x15x4xf32>
    %63 = tpu.concatenate %61, %62 in 1 : vector<6x1x4xf32>, vector<6x15x4xf32> -> vector<6x16x4xf32>
    %64 = vector.extract_strided_slice %60 {offsets = [0, 1, 0], sizes = [6, 15, 4], strides = [1, 1, 1]} : vector<6x16x4xf32> to vector<6x15x4xf32>
    %65 = tpu.concatenate %64, %61 in 1 : vector<6x15x4xf32>, vector<6x1x4xf32> -> vector<6x16x4xf32>
    %66 = tpu.concatenate %63, %60, %65 in 2 : vector<6x16x4xf32>, vector<6x16x4xf32>, vector<6x16x4xf32> -> vector<6x16x12xf32>
    %67 = vector.extract_strided_slice %66 {offsets = [0, 0, 0], sizes = [4, 16, 12], strides = [1, 1, 1]} : vector<6x16x12xf32> to vector<4x16x12xf32>
    %68 = vector.shape_cast %67 : vector<4x16x12xf32> to vector<64x12xf32>
    %c0_51 = arith.constant 0 : index
    %c0_52 = arith.constant 0 : index
    %c0_53 = arith.constant 0 : index
    %69 = vector.load %arg7[%c0_51, %c0_52, %c0_53] : memref<3x12x4xf32, #tpu.memory_space<vmem>>, vector<1x12x4xf32>
    %70 = vector.shape_cast %69 : vector<1x12x4xf32> to vector<12x4xf32>
    %cst_54 = arith.constant dense<0.000000e+00> : vector<64x4xf32>
    %71 = tpu.matmul %68, %70, %cst_54 {dimension_numbers = #tpu.dot_dimension_numbers<[1], [0], [0], [1], [0, 0, 1, 1], [], []>} : vector<64x12xf32>, vector<12x4xf32>, vector<64x4xf32> -> vector<64x4xf32>
    %72 = vector.extract_strided_slice %66 {offsets = [1, 0, 0], sizes = [4, 16, 12], strides = [1, 1, 1]} : vector<6x16x12xf32> to vector<4x16x12xf32>
    %73 = vector.shape_cast %72 : vector<4x16x12xf32> to vector<64x12xf32>
    %c1_55 = arith.constant 1 : index
    %c0_56 = arith.constant 0 : index
    %c0_57 = arith.constant 0 : index
    %74 = vector.load %arg7[%c1_55, %c0_56, %c0_57] : memref<3x12x4xf32, #tpu.memory_space<vmem>>, vector<1x12x4xf32>
    %75 = vector.shape_cast %74 : vector<1x12x4xf32> to vector<12x4xf32>
    %cst_58 = arith.constant dense<0.000000e+00> : vector<64x4xf32>
    %76 = tpu.matmul %73, %75, %cst_58 {dimension_numbers = #tpu.dot_dimension_numbers<[1], [0], [0], [1], [0, 0, 1, 1], [], []>} : vector<64x12xf32>, vector<12x4xf32>, vector<64x4xf32> -> vector<64x4xf32>
    %77 = arith.addf %71, %76 : vector<64x4xf32>
    %78 = vector.extract_strided_slice %66 {offsets = [2, 0, 0], sizes = [4, 16, 12], strides = [1, 1, 1]} : vector<6x16x12xf32> to vector<4x16x12xf32>
    %79 = vector.shape_cast %78 : vector<4x16x12xf32> to vector<64x12xf32>
    %c2_59 = arith.constant 2 : index
    %c0_60 = arith.constant 0 : index
    %c0_61 = arith.constant 0 : index
    %80 = vector.load %arg7[%c2_59, %c0_60, %c0_61] : memref<3x12x4xf32, #tpu.memory_space<vmem>>, vector<1x12x4xf32>
    %81 = vector.shape_cast %80 : vector<1x12x4xf32> to vector<12x4xf32>
    %cst_62 = arith.constant dense<0.000000e+00> : vector<64x4xf32>
    %82 = tpu.matmul %79, %81, %cst_62 {dimension_numbers = #tpu.dot_dimension_numbers<[1], [0], [0], [1], [0, 0, 1, 1], [], []>} : vector<64x12xf32>, vector<12x4xf32>, vector<64x4xf32> -> vector<64x4xf32>
    %83 = arith.addf %77, %82 : vector<64x4xf32>
    %84 = vector.shape_cast %83 : vector<64x4xf32> to vector<4x16x4xf32>
    %c0_63 = arith.constant 0 : index
    %c0_64 = arith.constant 0 : index
    %85 = vector.load %arg8[%c0_63, %c0_64] : memref<1x4xf32, #tpu.memory_space<vmem>>, vector<1x4xf32>
    %86 = vector.shape_cast %85 : vector<1x4xf32> to vector<4xf32>
    %87 = vector.shape_cast %86 : vector<4xf32> to vector<1x1x4xf32>
    %88 = vector.broadcast %87 : vector<1x1x4xf32> to vector<4x16x4xf32>
    %89 = arith.addf %84, %88 : vector<4x16x4xf32>
    %90 = arith.addf %89, %1 : vector<4x16x4xf32>
    %c0_65 = arith.constant 0 : index
    %c0_66 = arith.constant 0 : index
    %c0_67 = arith.constant 0 : index
    %c0_68 = arith.constant 0 : index
    %91 = vector.load %arg9[%c0_65, %c0_66, %c0_67, %c0_68] : memref<1x4x16x4xf32, #tpu.memory_space<vmem>>, vector<1x4x16x4xf32>
    %92 = vector.shape_cast %91 : vector<1x4x16x4xf32> to vector<4x16x4xf32>
    %93 = vector.shape_cast %90 : vector<4x16x4xf32> to vector<1x4x16x4xf32>
    tpu.vector_store %arg9[%c0_65, %c0_66, %c0_67, %c0_68], %93 {strides = array<i32>} : memref<1x4x16x4xf32, #tpu.memory_space<vmem>>, vector<1x4x16x4xf32>,
    return
  }
  func.func @transform_0(%arg0: i32, %arg1: i32) -> (i32, i32, i32, i32) {
    %c2_i32 = arith.constant 2 : i32
    %0 = arith.muli %arg0, %c2_i32 : i32
    %c1_i32 = arith.constant 1 : i32
    %1 = arith.subi %0, %c1_i32 : i32
    %c0_i32 = arith.constant 0 : i32
    %2 = arith.maxsi %1, %c0_i32 : i32
    %c0_i32_0 = arith.constant 0 : i32
    %c0_i32_1 = arith.constant 0 : i32
    %c0_i32_2 = arith.constant 0 : i32
    return %arg1, %2, %c0_i32_0, %c0_i32_1 : i32, i32, i32, i32
  }
  func.func @transform_1(%arg0: i32, %arg1: i32) -> (i32, i32, i32, i32) {
    %c0_i32 = arith.constant 0 : i32
    %c0_i32_0 = arith.constant 0 : i32
    %c0_i32_1 = arith.constant 0 : i32
    return %arg1, %arg0, %c0_i32, %c0_i32_0 : i32, i32, i32, i32
  }
  func.func @transform_2(%arg0: i32, %arg1: i32) -> (i32, i32, i32, i32) {
    %c1_i32 = arith.constant 1 : i32
    %0 = arith.addi %arg0, %c1_i32 : i32
    %c2_i32 = arith.constant 2 : i32
    %1 = arith.muli %0, %c2_i32 : i32
    %c7_i32 = arith.constant 7 : i32
    %2 = arith.minsi %1, %c7_i32 : i32
    %c0_i32 = arith.constant 0 : i32
    %c0_i32_0 = arith.constant 0 : i32
    %c0_i32_1 = arith.constant 0 : i32
    return %arg1, %2, %c0_i32, %c0_i32_0 : i32, i32, i32, i32
  }
  func.func @transform_3(%arg0: i32, %arg1: i32) -> (i32, i32, i32) {
    %c0_i32 = arith.constant 0 : i32
    %c0_i32_0 = arith.constant 0 : i32
    %c0_i32_1 = arith.constant 0 : i32
    %c0_i32_2 = arith.constant 0 : i32
    return %c0_i32, %c0_i32_0, %c0_i32_1 : i32, i32, i32
  }
  func.func @transform_4(%arg0: i32, %arg1: i32) -> (i32, i32) {
    %c0_i32 = arith.constant 0 : i32
    %c0_i32_0 = arith.constant 0 : i32
    %c0_i32_1 = arith.constant 0 : i32
    return %c0_i32, %c0_i32_0 : i32, i32
  }
  func.func @transform_5(%arg0: i32, %arg1: i32) -> (i32, i32, i32) {
    %c0_i32 = arith.constant 0 : i32
    %c0_i32_0 = arith.constant 0 : i32
    %c0_i32_1 = arith.constant 0 : i32
    %c0_i32_2 = arith.constant 0 : i32
    return %c0_i32, %c0_i32_0, %c0_i32_1 : i32, i32, i32
  }
  func.func @transform_6(%arg0: i32, %arg1: i32) -> (i32, i32) {
    %c0_i32 = arith.constant 0 : i32
    %c0_i32_0 = arith.constant 0 : i32
    %c0_i32_1 = arith.constant 0 : i32
    return %c0_i32, %c0_i32_0 : i32, i32
  }
  func.func @transform_7(%arg0: i32, %arg1: i32) -> (i32, i32, i32, i32) {
    %c0_i32 = arith.constant 0 : i32
    %c0_i32_0 = arith.constant 0 : i32
    %c0_i32_1 = arith.constant 0 : i32
    return %arg1, %arg0, %c0_i32, %c0_i32_0 : i32, i32, i32, i32
  }
}

</mosaic_0001>

<llo_original>
// kernel: tpu_custom_call.1
$region0: #{tpu_custom_call.1}
  #allocation0 [shape = 'u32[]', space=smem, size = 0x4, offset = 0x4, fixed_abs, tag = 'smem constant byte address 0x4 - core index']
  #allocation1 [shape = 'u32[72,128]{1,0:T(1,128)}', space=vmem, size = 0x9000, scoped, tag = 'internal scratch']
  #allocation2 [shape = 'f32[8,16,4]{2,1,0:T(8,128)}', space=vmem, size = 0x10000, scoped, tag = 'scratch operand']
  #allocation3 [shape = 'f32[6,16,4]{2,1,0:T(8,128)}', space=vmem, size = 0xc000, scoped, tag = 'scratch operand']
  %s0 = inlined_call_operand.vmem [shape: f32[2,16,16,4], index: 0, kind: input, shape index: {}]
  %s1 = inlined_call_operand.vmem [shape: f32[2,16,16,4], index: 1, kind: input, shape index: {}]
  %s2 = inlined_call_operand.vmem [shape: f32[2,16,16,4], index: 2, kind: input, shape index: {}]
  %s3 = inlined_call_operand.vmem [shape: f32[3,12,4], index: 3, kind: input, shape index: {}]
  %s4 = inlined_call_operand.vmem [shape: f32[1,4], index: 4, kind: input, shape index: {}]
  %s5 = inlined_call_operand.vmem [shape: f32[3,12,4], index: 5, kind: input, shape index: {}]
  %s6 = inlined_call_operand.vmem [shape: f32[1,4], index: 6, kind: input, shape index: {}]
  %s7 = inlined_call_operand.vmem [shape: f32[2,16,16,4], index: 7, kind: output, shape index: {}]
  %s8 = sld [smem:[#allocation0]]
  $region69: #{tpu_custom_call.1} parent=0
    _
  %s10 = ssub.s32 1, %s8
  %s11 = scalar_select 0, %s10, %s8
  loop: start=0, step=1, limit=10
  $region2: #{tpu_custom_call.1} parent=0 // loop_pre_header
    _
  $region3: #{tpu_custom_call.1} parent=0 // loop_header
    %s13 = sphi 0, %s17
    %p14 = scmp.ge.s32.totalorder %s13, 10
    %s20 = sphi 0, %s32
    %s21 = sphi 0, %s28
    %s22 = sphi 0, %s20
    %s23 = sphi 0, %s21
    %s24 = sphi 0, %s22
    %s25 = sphi 0, %s23
    %s45 = sphi 0, %s47
    %s48 = sphi 0, %s45
    %s49 = sphi 0, %s48
    %s65 = sphi 0, %s49
    %s73 = sphi 0, %s75
    %s76 = sphi 0, %s73
    %s77 = sphi 0, %s76
    %s93 = sphi 0, %s77
    %s109 = sphi 0, %s111
    %s112 = sphi 0, %s109
    %s113 = sphi 0, %s112
    %s129 = sphi 0, %s113
    %s133 = sphi 0, %s133
    %s135 = sphi 0, %s133
    %s136 = sphi 0, %s135
    %s150 = sphi 0, %s136
    %s154 = sphi 0, %s154
    %s156 = sphi 0, %s154
    %s157 = sphi 0, %s156
    %s171 = sphi 0, %s157
    %s175 = sphi 0, %s175
    %s177 = sphi 0, %s175
    %s178 = sphi 0, %s177
    %s192 = sphi 0, %s178
    %s196 = sphi 0, %s196
    %s198 = sphi 0, %s196
    %s199 = sphi 0, %s198
    %s213 = sphi 0, %s199
    %s221 = sphi 0, %s223
    %s224 = sphi 0, %s221
    %s225 = sphi 0, %s224
    %s241 = sphi 0, %s225
  $region4: #{tpu_custom_call.1} parent=0 // loop_header_branch
    %16 = sbr.rel (%p14) target = $region8
  $region5: #{tpu_custom_call.1} parent=0 // loop_body
    %s18 = ssub.s32 %s13, 1
    %s19 = ssub.s32 %s13, 2
    %s26 = sadd.s32 1, %s21
    %p27 = scmp.ge.s32.totalorder %s26, 2
    %s28 = scalar_select %p27, 0, %s26
    %s29 = sadd.s32 1, %s20
    %s30 = scalar_select %p27, %s29, %s20
    %p31 = scmp.ge.s32.totalorder %s30, 4
    %s32 = scalar_select %p31, 0, %s30
    %s33 = smul.u32 %s20, 2
    %s34 = ssub.s32 %s33, 1
    %p35 = scmp.gt.s32.totalorder %s34, 0
    %s36 = scalar_select %p35, %s34, 0
    %s37 = smul.u32 %s32, 2
    %s38 = ssub.s32 %s37, 1
    %p39 = scmp.gt.s32.totalorder %s38, 0
    %s40 = scalar_select %p39, %s38, 0
    %s41 = ssub.s32 %s21, %s28
    %s42 = ssub.s32 %s36, %s40
    %s43 = sor.u32 %s41, %s42
    %p44 = scmp.eq.s32.totalorder %s43, 0
    %s46 = sadd.s32 %s45, 1
    %s47 = scalar_select %p44, %s45, %s46
    %p50 = pneg %p44
    %p51 = scmp.eq.s32.totalorder %s13, 7
    %p52 = por %p50, %p51
    %p53 = scmp.ne.s32.totalorder %s45, %s48
    %p54 = scmp.eq.s32.totalorder %s13, 0
    %p55 = por %p53, %p54
    %p56 = scmp.ne.s32.totalorder %s45, %s48
    %p57 = scmp.eq.s32.totalorder %s18, 7
    %p58 = por %p56, %p57
    %p59 = scmp.ne.s32.totalorder %s48, %s49
    %p60 = scmp.eq.s32.totalorder %s18, 0
    %p61 = por %p59, %p60
    %p62 = scmp.ne.s32.totalorder %s48, %s49
    %p63 = scmp.eq.s32.totalorder %s19, 7
    %p64 = por %p62, %p63
    %p66 = scmp.ne.s32.totalorder %s49, %s65
    %p67 = scmp.eq.s32.totalorder %s19, 0
    %p68 = por %p66, %p67
    %s69 = ssub.s32 %s21, %s28
    %s70 = ssub.s32 %s20, %s32
    %s71 = sor.u32 %s69, %s70
    %p72 = scmp.eq.s32.totalorder %s71, 0
    %s74 = sadd.s32 %s73, 1
    %s75 = scalar_select %p72, %s73, %s74
    %p78 = pneg %p72
    %p79 = scmp.eq.s32.totalorder %s13, 7
    %p80 = por %p78, %p79
    %p81 = scmp.ne.s32.totalorder %s73, %s76
    %p82 = scmp.eq.s32.totalorder %s13, 0
    %p83 = por %p81, %p82
    %p84 = scmp.ne.s32.totalorder %s73, %s76
    %p85 = scmp.eq.s32.totalorder %s18, 7
    %p86 = por %p84, %p85
    %p87 = scmp.ne.s32.totalorder %s76, %s77
    %p88 = scmp.eq.s32.totalorder %s18, 0
    %p89 = por %p87, %p88
    %p90 = scmp.ne.s32.totalorder %s76, %s77
    %p91 = scmp.eq.s32.totalorder %s19, 7
    %p92 = por %p90, %p91
    %p94 = scmp.ne.s32.totalorder %s77, %s93
    %p95 = scmp.eq.s32.totalorder %s19, 0
    %p96 = por %p94, %p95
    %s97 = sadd.s32 %s20, 1
    %s98 = smul.u32 %s97, 2
    %p99 = scmp.lt.s32.totalorder %s98, 7
    %s100 = scalar_select %p99, %s98, 7
    %s101 = sadd.s32 %s32, 1
    %s102 = smul.u32 %s101, 2
    %p103 = scmp.lt.s32.totalorder %s102, 7
    %s104 = scalar_select %p103, %s102, 7
    %s105 = ssub.s32 %s21, %s28
    %s106 = ssub.s32 %s100, %s104
    %s107 = sor.u32 %s105, %s106
    %p108 = scmp.eq.s32.totalorder %s107, 0
    %s110 = sadd.s32 %s109, 1
    %s111 = scalar_select %p108, %s109, %s110
    %p114 = pneg %p108
    %p115 = scmp.eq.s32.totalorder %s13, 7
    %p116 = por %p114, %p115
    %p117 = scmp.ne.s32.totalorder %s109, %s112
    %p118 = scmp.eq.s32.totalorder %s13, 0
    %p119 = por %p117, %p118
    %p120 = scmp.ne.s32.totalorder %s109, %s112
    %p121 = scmp.eq.s32.totalorder %s18, 7
    %p122 = por %p120, %p121
    %p123 = scmp.ne.s32.totalorder %s112, %s113
    %p124 = scmp.eq.s32.totalorder %s18, 0
    %p125 = por %p123, %p124
    %p126 = scmp.ne.s32.totalorder %s112, %s113
    %p127 = scmp.eq.s32.totalorder %s19, 7
    %p128 = por %p126, %p127
    %p130 = scmp.ne.s32.totalorder %s113, %s129
    %p131 = scmp.eq.s32.totalorder %s19, 0
    %p132 = por %p130, %p131
    %s134 = sadd.s32 %s133, 1
    %p137 = scmp.eq.s32.totalorder %s13, 7
    %p138 = scmp.ne.s32.totalorder %s133, %s135
    %p139 = scmp.eq.s32.totalorder %s13, 0
    %p140 = por %p138, %p139
    %p141 = scmp.ne.s32.totalorder %s133, %s135
    %p142 = scmp.eq.s32.totalorder %s18, 7
    %p143 = por %p141, %p142
    %p144 = scmp.ne.s32.totalorder %s135, %s136
    %p145 = scmp.eq.s32.totalorder %s18, 0
    %p146 = por %p144, %p145
    %p147 = scmp.ne.s32.totalorder %s135, %s136
    %p148 = scmp.eq.s32.totalorder %s19, 7
    %p149 = por %p147, %p148
    %p151 = scmp.ne.s32.totalorder %s136, %s150
    %p152 = scmp.eq.s32.totalorder %s19, 0
    %p153 = por %p151, %p152
    %s155 = sadd.s32 %s154, 1
    %p158 = scmp.eq.s32.totalorder %s13, 7
    %p159 = scmp.ne.s32.totalorder %s154, %s156
    %p160 = scmp.eq.s32.totalorder %s13, 0
    %p161 = por %p159, %p160
    %p162 = scmp.ne.s32.totalorder %s154, %s156
    %p163 = scmp.eq.s32.totalorder %s18, 7
    %p164 = por %p162, %p163
    %p165 = scmp.ne.s32.totalorder %s156, %s157
    %p166 = scmp.eq.s32.totalorder %s18, 0
    %p167 = por %p165, %p166
    %p168 = scmp.ne.s32.totalorder %s156, %s157
    %p169 = scmp.eq.s32.totalorder %s19, 7
    %p170 = por %p168, %p169
    %p172 = scmp.ne.s32.totalorder %s157, %s171
    %p173 = scmp.eq.s32.totalorder %s19, 0
    %p174 = por %p172, %p173
    %s176 = sadd.s32 %s175, 1
    %p179 = scmp.eq.s32.totalorder %s13, 7
    %p180 = scmp.ne.s32.totalorder %s175, %s177
    %p181 = scmp.eq.s32.totalorder %s13, 0
    %p182 = por %p180, %p181
    %p183 = scmp.ne.s32.totalorder %s175, %s177
    %p184 = scmp.eq.s32.totalorder %s18, 7
    %p185 = por %p183, %p184
    %p186 = scmp.ne.s32.totalorder %s177, %s178
    %p187 = scmp.eq.s32.totalorder %s18, 0
    %p188 = por %p186, %p187
    %p189 = scmp.ne.s32.totalorder %s177, %s178
    %p190 = scmp.eq.s32.totalorder %s19, 7
    %p191 = por %p189, %p190
    %p193 = scmp.ne.s32.totalorder %s178, %s192
    %p194 = scmp.eq.s32.totalorder %s19, 0
    %p195 = por %p193, %p194
    %s197 = sadd.s32 %s196, 1
    %p200 = scmp.eq.s32.totalorder %s13, 7
    %p201 = scmp.ne.s32.totalorder %s196, %s198
    %p202 = scmp.eq.s32.totalorder %s13, 0
    %p203 = por %p201, %p202
    %p204 = scmp.ne.s32.totalorder %s196, %s198
    %p205 = scmp.eq.s32.totalorder %s18, 7
    %p206 = por %p204, %p205
    %p207 = scmp.ne.s32.totalorder %s198, %s199
    %p208 = scmp.eq.s32.totalorder %s18, 0
    %p209 = por %p207, %p208
    %p210 = scmp.ne.s32.totalorder %s198, %s199
    %p211 = scmp.eq.s32.totalorder %s19, 7
    %p212 = por %p210, %p211
    %p214 = scmp.ne.s32.totalorder %s199, %s213
    %p215 = scmp.eq.s32.totalorder %s19, 0
    %p216 = por %p214, %p215
    %s217 = ssub.s32 %s21, %s28
    %s218 = ssub.s32 %s20, %s32
    %s219 = sor.u32 %s217, %s218
    %p220 = scmp.eq.s32.totalorder %s219, 0
    %s222 = sadd.s32 %s221, 1
    %s223 = scalar_select %p220, %s221, %s222
    %p226 = pneg %p220
    %p227 = scmp.eq.s32.totalorder %s13, 7
    %p228 = por %p226, %p227
    %p229 = scmp.ne.s32.totalorder %s221, %s224
    %p230 = scmp.eq.s32.totalorder %s13, 0
    %p231 = por %p229, %p230
    %p232 = scmp.ne.s32.totalorder %s221, %s224
    %p233 = scmp.eq.s32.totalorder %s18, 7
    %p234 = por %p232, %p233
    %p235 = scmp.ne.s32.totalorder %s224, %s225
    %p236 = scmp.eq.s32.totalorder %s18, 0
    %p237 = por %p235, %p236
    %p238 = scmp.ne.s32.totalorder %s224, %s225
    %p239 = scmp.eq.s32.totalorder %s19, 7
    %p240 = por %p238, %p239
    %p242 = scmp.ne.s32.totalorder %s225, %s241
    %p243 = scmp.eq.s32.totalorder %s19, 0
    %p244 = por %p242, %p243
    %p245 = scmp.le.s32.totalorder 1, %s13
    %p246 = scmp.lt.s32.totalorder %s13, 9
    %p247 = pnand %p245, %p246
    %p248 = pneg %p247
    // Predicated region
    $region9: #{tpu_custom_call.1} parent=5 // pred_check
      _
    $region10: #{tpu_custom_call.1} parent=5 // pred_check_branch
      %250 = sbr.rel (%p247) target = $region12
    $region11: #{tpu_custom_call.1} parent=5 // pred_region
      %s251 = ssub.s32 %s13, 1
      // Predicated region
      $region13: #{tpu_custom_call.1} parent=11 // pred_check
        %p252 = pneg %p146
      $region14: #{tpu_custom_call.1} parent=11 // pred_check_branch
        %254 = sbr.rel (%p252) target = $region16
      $region15: #{tpu_custom_call.1} parent=11 // pred_region
        _
      $region16: #{tpu_custom_call.1} parent=11 // pred_fallthru
        _
      // Predicated region
      $region17: #{tpu_custom_call.1} parent=11 // pred_check
        %p255 = pneg %p167
      $region18: #{tpu_custom_call.1} parent=11 // pred_check_branch
        %257 = sbr.rel (%p255) target = $region20
      $region19: #{tpu_custom_call.1} parent=11 // pred_region
        _
      $region20: #{tpu_custom_call.1} parent=11 // pred_fallthru
        _
      // Predicated region
      $region21: #{tpu_custom_call.1} parent=11 // pred_check
        %p258 = pneg %p188
      $region22: #{tpu_custom_call.1} parent=11 // pred_check_branch
        %260 = sbr.rel (%p258) target = $region24
      $region23: #{tpu_custom_call.1} parent=11 // pred_region
        _
      $region24: #{tpu_custom_call.1} parent=11 // pred_fallthru
        _
      // Predicated region
      $region25: #{tpu_custom_call.1} parent=11 // pred_check
        %p261 = pneg %p209
      $region26: #{tpu_custom_call.1} parent=11 // pred_check_branch
        %263 = sbr.rel (%p261) target = $region28
      $region27: #{tpu_custom_call.1} parent=11 // pred_region
        _
      $region28: #{tpu_custom_call.1} parent=11 // pred_fallthru
        _
    $region12: #{tpu_custom_call.1} parent=5 // pred_fallthru
      _
    %p264 = scmp.lt.s32.totalorder %s13, 8
    // Predicated region
    $region29: #{tpu_custom_call.1} parent=5 // pred_check
      %p265 = pneg %p264
    $region30: #{tpu_custom_call.1} parent=5 // pred_check_branch
      %267 = sbr.rel (%p265) target = $region32
    $region31: #{tpu_custom_call.1} parent=5 // pred_region
      // Predicated region
      $region33: #{tpu_custom_call.1} parent=31 // pred_check
        %p268 = pneg %p55
      $region34: #{tpu_custom_call.1} parent=31 // pred_check_branch
        %270 = sbr.rel (%p268) target = $region36
      $region35: #{tpu_custom_call.1} parent=31 // pred_region
        %s271 = smul.u32 %s20, 2
        %s272 = ssub.s32 %s271, 1
        %p273 = scmp.gt.s32.totalorder %s272, 0
        %s274 = scalar_select %p273, %s272, 0
        %s275 = smul.u32 2, %s274
        %p276 = scmp.lt.s32.totalorder %s21, 1
        %s277 = scalar_select %p276, %s21, 1
        %p278 = scmp.lt.s32.totalorder %s275, 15
        %s279 = scalar_select %p278, %s275, 15
        %s280 = smul.addr %s279, 2
        %s281 = smul.addr %s277, 32
        %s282 = sadd.s32 %s280, %s281
        %s283 = smul.addr %s282, 8
        %s284 = scalar_lea.vmem %s0, %s283
        %s285 = smul.u32 %s20, 2
        %s286 = ssub.s32 %s285, 1
        %p287 = scmp.gt.s32.totalorder %s286, 0
        %s288 = scalar_select %p287, %s286, 0
        %s289 = smul.u32 2, %s288
      $region36: #{tpu_custom_call.1} parent=31 // pred_fallthru
        _
      // Predicated region
      $region37: #{tpu_custom_call.1} parent=31 // pred_check
        %p290 = pneg %p83
      $region38: #{tpu_custom_call.1} parent=31 // pred_check_branch
        %292 = sbr.rel (%p290) target = $region40
      $region39: #{tpu_custom_call.1} parent=31 // pred_region
        %s293 = smul.u32 4, %s20
        %p294 = scmp.lt.s32.totalorder %s21, 1
        %s295 = scalar_select %p294, %s21, 1
        %p296 = scmp.lt.s32.totalorder %s293, 15
        %s297 = scalar_select %p296, %s293, 15
        %s298 = smul.addr %s297, 2
        %s299 = smul.addr %s295, 32
        %s300 = sadd.s32 %s298, %s299
        %s301 = smul.addr %s300, 8
        %s302 = scalar_lea.vmem %s1, %s301
        %s303 = smul.u32 4, %s20
      $region40: #{tpu_custom_call.1} parent=31 // pred_fallthru
        _
      // Predicated region
      $region41: #{tpu_custom_call.1} parent=31 // pred_check
        %p304 = pneg %p119
      $region42: #{tpu_custom_call.1} parent=31 // pred_check_branch
        %306 = sbr.rel (%p304) target = $region44
      $region43: #{tpu_custom_call.1} parent=31 // pred_region
        %s307 = sadd.s32 %s20, 1
        %s308 = smul.u32 %s307, 2
        %p309 = scmp.lt.s32.totalorder %s308, 7
        %s310 = scalar_select %p309, %s308, 7
        %s311 = smul.u32 2, %s310
        %p312 = scmp.lt.s32.totalorder %s21, 1
        %s313 = scalar_select %p312, %s21, 1
        %p314 = scmp.lt.s32.totalorder %s311, 15
        %s315 = scalar_select %p314, %s311, 15
        %s316 = smul.addr %s315, 2
        %s317 = smul.addr %s313, 32
        %s318 = sadd.s32 %s316, %s317
        %s319 = smul.addr %s318, 8
        %s320 = scalar_lea.vmem %s2, %s319
        %s321 = sadd.s32 %s20, 1
        %s322 = smul.u32 %s321, 2
        %p323 = scmp.lt.s32.totalorder %s322, 7
        %s324 = scalar_select %p323, %s322, 7
        %s325 = smul.u32 2, %s324
      $region44: #{tpu_custom_call.1} parent=31 // pred_fallthru
        _
    $region32: #{tpu_custom_call.1} parent=5 // pred_fallthru
      _
    %p326 = scmp.le.s32.totalorder 1, %s13
    %p327 = scmp.lt.s32.totalorder %s13, 9
    %p328 = pnand %p326, %p327
    %p329 = pneg %p328
    // Predicated region
    $region45: #{tpu_custom_call.1} parent=5 // pred_check
      _
    $region46: #{tpu_custom_call.1} parent=5 // pred_check_branch
      %331 = sbr.rel (%p328) target = $region48
    $region47: #{tpu_custom_call.1} parent=5 // pred_region
      %s332 = ssub.s32 %s13, 1
      %s333 = smul.u32 %s22, 2
      %s334 = ssub.s32 %s333, 1
      %p335 = scmp.gt.s32.totalorder %s334, 0
      %s336 = scalar_select %p335, %s334, 0
      %s337 = smul.u32 2, %s336
      %p338 = scmp.lt.s32.totalorder %s23, 1
      %s339 = scalar_select %p338, %s23, 1
      %p340 = scmp.lt.s32.totalorder %s337, 15
      %s341 = scalar_select %p340, %s337, 15
      %s342 = smul.addr %s341, 2
      %s343 = smul.addr %s339, 32
      %s344 = sadd.s32 %s342, %s343
      %s345 = smul.addr %s344, 8
      %s346 = scalar_lea.vmem %s0, %s345
      %p347 = pneg %p61
      %p348 = pneg %p58
      %s349 = smul.u32 4, %s22
      %p350 = scmp.lt.s32.totalorder %s23, 1
      %s351 = scalar_select %p350, %s23, 1
      %p352 = scmp.lt.s32.totalorder %s349, 15
      %s353 = scalar_select %p352, %s349, 15
      %s354 = smul.addr %s353, 2
      %s355 = smul.addr %s351, 32
      %s356 = sadd.s32 %s354, %s355
      %s357 = smul.addr %s356, 8
      %s358 = scalar_lea.vmem %s1, %s357
      %p359 = pneg %p89
      %p360 = pneg %p86
      %s361 = sadd.s32 %s22, 1
      %s362 = smul.u32 %s361, 2
      %p363 = scmp.lt.s32.totalorder %s362, 7
      %s364 = scalar_select %p363, %s362, 7
      %s365 = smul.u32 2, %s364
      %p366 = scmp.lt.s32.totalorder %s23, 1
      %s367 = scalar_select %p366, %s23, 1
      %p368 = scmp.lt.s32.totalorder %s365, 15
      %s369 = scalar_select %p368, %s365, 15
      %s370 = smul.addr %s369, 2
      %s371 = smul.addr %s367, 32
      %s372 = sadd.s32 %s370, %s371
      %s373 = smul.addr %s372, 8
      %s374 = scalar_lea.vmem %s2, %s373
      %p375 = pneg %p125
      %p376 = pneg %p122
      %p377 = pneg %p146
      %p378 = pneg %p143
      %p379 = pneg %p167
      %p380 = pneg %p164
      %p381 = pneg %p188
      %p382 = pneg %p185
      %p383 = pneg %p209
      %p384 = pneg %p206
      %p385 = pneg %p237
      %p386 = pneg %p234
      %s387 = smul.u32 4, %s22
      %p388 = scmp.lt.s32.totalorder %s23, 1
      %s389 = scalar_select %p388, %s23, 1
      %p390 = scmp.lt.s32.totalorder %s387, 15
      %s391 = scalar_select %p390, %s387, 15
      %s392 = smul.addr %s391, 2
      %s393 = smul.addr %s389, 32
      %s394 = sadd.s32 %s392, %s393
      %s395 = smul.addr %s394, 8
      %s396 = scalar_lea.vmem %s7, %s395
      %s397 = smul.u32 %s22, 2
      %s398 = ssub.s32 %s397, 1
      %p399 = scmp.gt.s32.totalorder %s398, 0
      %s400 = scalar_select %p399, %s398, 0
      %s401 = smul.u32 2, %s400
      %p402 = scmp.lt.s32.totalorder %s23, 1
      %s403 = scalar_select %p402, %s23, 1
      %p404 = scmp.lt.s32.totalorder %s401, 15
      %s405 = scalar_select %p404, %s401, 15
      %s406 = smul.addr %s405, 2
      %s407 = smul.addr %s403, 32
      %s408 = sadd.s32 %s406, %s407
      %s409 = smul.addr %s408, 8
      %s410 = scalar_lea.vmem %s0, %s409
      %s411 = smul.u32 %s22, 2
      %s412 = ssub.s32 %s411, 1
      %p413 = scmp.gt.s32.totalorder %s412, 0
      %s414 = scalar_select %p413, %s412, 0
      %s415 = smul.u32 2, %s414
      %s416 = smul.u32 4, %s22
      %p417 = scmp.lt.s32.totalorder %s23, 1
      %s418 = scalar_select %p417, %s23, 1
      %p419 = scmp.lt.s32.totalorder %s416, 15
      %s420 = scalar_select %p419, %s416, 15
      %s421 = smul.addr %s420, 2
      %s422 = smul.addr %s418, 32
      %s423 = sadd.s32 %s421, %s422
      %s424 = smul.addr %s423, 8
      %s425 = scalar_lea.vmem %s1, %s424
      %s426 = smul.u32 4, %s22
      %s427 = sadd.s32 %s22, 1
      %s428 = smul.u32 %s427, 2
      %p429 = scmp.lt.s32.totalorder %s428, 7
      %s430 = scalar_select %p429, %s428, 7
      %s431 = smul.u32 2, %s430
      %p432 = scmp.lt.s32.totalorder %s23, 1
      %s433 = scalar_select %p432, %s23, 1
      %p434 = scmp.lt.s32.totalorder %s431, 15
      %s435 = scalar_select %p434, %s431, 15
      %s436 = smul.addr %s435, 2
      %s437 = smul.addr %s433, 32
      %s438 = sadd.s32 %s436, %s437
      %s439 = smul.addr %s438, 8
      %s440 = scalar_lea.vmem %s2, %s439
      %s441 = sadd.s32 %s22, 1
      %s442 = smul.u32 %s441, 2
      %p443 = scmp.lt.s32.totalorder %s442, 7
      %s444 = scalar_select %p443, %s442, 7
      %s445 = smul.u32 2, %s444
      %s446 = smul.u32 4, %s22
      %p447 = scmp.lt.s32.totalorder %s23, 1
      %s448 = scalar_select %p447, %s23, 1
      %p449 = scmp.lt.s32.totalorder %s446, 15
      %s450 = scalar_select %p449, %s446, 15
      %s451 = smul.addr %s450, 2
      %s452 = smul.addr %s448, 32
      %s453 = sadd.s32 %s451, %s452
      %s454 = smul.addr %s453, 8
      %s455 = scalar_lea.vmem %s7, %s454
      %s456 = smul.u32 4, %s22
      %v457 = vld [vmem:[%s425] sm:$0xff]
      %v458 = vld [vmem:[%s425 + $0x8] sm:$0xff]
      %v459 = vld [vmem:[%s425 + $0x10] sm:$0xff]
      %v460 = vld [vmem:[%s425 + $0x18] sm:$0xff]
      %v461 = vld [vmem:[%s425 + $0x20] sm:$0xff]
      %v462 = vld [vmem:[%s425 + $0x28] sm:$0xff]
      %v463 = vld [vmem:[%s425 + $0x30] sm:$0xff]
      %v464 = vld [vmem:[%s425 + $0x38] sm:$0xff]
      %v465 = vmax.f32 %v457, 0.0
      %v466 = vmax.f32 %v458, 0.0
      %v467 = vmax.f32 %v459, 0.0
      %v468 = vmax.f32 %v460, 0.0
      %v469 = vmax.f32 %v461, 0.0
      %v470 = vmax.f32 %v462, 0.0
      %v471 = vmax.f32 %v463, 0.0
      %v472 = vmax.f32 %v464, 0.0
      %s473 = scalar_lea.vmem [#allocation2], 32
      %vm474 = vcmask 31744
      %475 = vst.msk [vmem:[%s473] sm:$0xff] %vm474, %v465
      %476 = vst.msk [vmem:[%s473 + $0x8] sm:$0xff] %vm474, %v466
      %477 = vst.msk [vmem:[%s473 + $0x10] sm:$0xff] %vm474, %v467
      %478 = vst.msk [vmem:[%s473 + $0x18] sm:$0xff] %vm474, %v468
      %479 = vst.msk [vmem:[%s473 + $0x20] sm:$0xff] %vm474, %v469
      %480 = vst.msk [vmem:[%s473 + $0x28] sm:$0xff] %vm474, %v470
      %481 = vst.msk [vmem:[%s473 + $0x30] sm:$0xff] %vm474, %v471
      %482 = vst.msk [vmem:[%s473 + $0x38] sm:$0xff] %vm474, %v472
      %p483 = scmp.gt.s32.totalorder %s22, 0
      %v484 = vld [vmem:[%s410] sm:$0xff]
      %v485 = vld [vmem:[%s410 + $0x8] sm:$0xff]
      %v486 = vld [vmem:[%s410 + $0x10] sm:$0xff]
      %v487 = vld [vmem:[%s410 + $0x18] sm:$0xff]
      %v488 = vmax.f32 %v484, 0.0
      %v489 = vmax.f32 %v485, 0.0
      %v490 = vmax.f32 %v486, 0.0
      %v491 = vmax.f32 %v487, 0.0
      %s492 = scalar_select %p483, 1, 0
      %v493 = vstv %s492
      %vm494 = vcmp.eq.s32.totalorder %v493, 1
      %v495 = vsel %vm494, %v488, 0.0
      %v496 = vsel %vm494, %v489, 0.0
      %v497 = vsel %vm494, %v490, 0.0
      %v498 = vsel %vm494, %v491, 0.0
      %499 = vst.msk [vmem:[#allocation2] sm:$0xff] %vm474, %v495
      %500 = vst.msk [vmem:[#allocation2 + $0x8] sm:$0xff] %vm474, %v496
      %501 = vst.msk [vmem:[#allocation2 + $0x10] sm:$0xff] %vm474, %v497
      %502 = vst.msk [vmem:[#allocation2 + $0x18] sm:$0xff] %vm474, %v498
      %p503 = scmp.lt.s32.totalorder %s22, 3
      %v504 = vld [vmem:[%s440] sm:$0xff]
      %v505 = vld [vmem:[%s440 + $0x8] sm:$0xff]
      %v506 = vld [vmem:[%s440 + $0x10] sm:$0xff]
      %v507 = vld [vmem:[%s440 + $0x18] sm:$0xff]
      %v508 = vmax.f32 %v504, 0.0
      %v509 = vmax.f32 %v505, 0.0
      %v510 = vmax.f32 %v506, 0.0
      %v511 = vmax.f32 %v507, 0.0
      %s512 = scalar_select %p503, 1, 0
      %v513 = vstv %s512
      %vm514 = vcmp.eq.s32.totalorder %v513, 1
      %v515 = vsel %vm514, %v508, 0.0
      %v516 = vsel %vm514, %v509, 0.0
      %v517 = vsel %vm514, %v510, 0.0
      %v518 = vsel %vm514, %v511, 0.0
      %s519 = scalar_lea.vmem [#allocation2], 96
      %520 = vst.msk [vmem:[%s519] sm:$0xff] %vm474, %v515
      %521 = vst.msk [vmem:[%s519 + $0x8] sm:$0xff] %vm474, %v516
      %522 = vst.msk [vmem:[%s519 + $0x10] sm:$0xff] %vm474, %v517
      %523 = vst.msk [vmem:[%s519 + $0x18] sm:$0xff] %vm474, %v518
      %v524 = vld [vmem:[#allocation2] sm:$0xff]
      %v525 = vld [vmem:[#allocation2 + $0x8] sm:$0xff]
      %v526 = vld [vmem:[#allocation2 + $0x10] sm:$0xff]
      %v527 = vld [vmem:[#allocation2 + $0x18] sm:$0xff]
      %v528 = vld [vmem:[#allocation2 + $0x20] sm:$0xff]
      %v529 = vld [vmem:[#allocation2 + $0x28] sm:$0xff]
      %v530 = vld [vmem:[#allocation2 + $0x30] sm:$0xff]
      %v531 = vld [vmem:[#allocation2 + $0x38] sm:$0xff]
      %v532 = vld [vmem:[#allocation2 + $0x40] sm:$0xff]
      %v533 = vld [vmem:[#allocation2 + $0x48] sm:$0xff]
      %v534 = vld [vmem:[#allocation2 + $0x50] sm:$0xff]
      %v535 = vld [vmem:[#allocation2 + $0x58] sm:$0xff]
      %v536 = vld [vmem:[#allocation2 + $0x60] sm:$0xff]
      %v537 = vld [vmem:[#allocation2 + $0x68] sm:$0xff]
      %v538 = vld [vmem:[#allocation2 + $0x70] sm:$0xff]
      %v539 = vld [vmem:[#allocation2 + $0x78] sm:$0xff]
      %vm556 = vcmask 1040384
      %v557 = vrot.slane %v524, 7
      %v558 = vrot.slane %v525, 7
      %v559 = vsel %vm556, %v557, %v558
      %v560 = vrot.slane %v526, 7
      %v561 = vrot.slane %v527, 7
      %v562 = vsel %vm556, %v560, %v561
      %v563 = vrot.slane %v528, 7
      %v564 = vrot.slane %v529, 7
      %v565 = vsel %vm556, %v563, %v564
      %v566 = vrot.slane %v530, 7
      %v567 = vrot.slane %v531, 7
      %v568 = vsel %vm556, %v566, %v567
      %v569 = vrot.slane %v532, 7
      %v570 = vrot.slane %v533, 7
      %v571 = vsel %vm556, %v569, %v570
      %v572 = vrot.slane %v534, 7
      %v573 = vrot.slane %v535, 7
      %v574 = vsel %vm556, %v572, %v573
      %v575 = vrot.slane %v536, 7
      %v576 = vrot.slane %v537, 7
      %v577 = vsel %vm556, %v575, %v576
      %v578 = vrot.slane %v538, 7
      %v579 = vrot.slane %v539, 7
      %v580 = vsel %vm556, %v578, %v579
      %v597 = vsel %vm556, 0.0, %v557
      %v598 = vsel %vm556, 0.0, %v560
      %v599 = vsel %vm556, 0.0, %v563
      %v600 = vsel %vm556, 0.0, %v566
      %v601 = vsel %vm556, 0.0, %v569
      %v602 = vsel %vm556, 0.0, %v572
      %v603 = vsel %vm556, 0.0, %v575
      %v604 = vsel %vm556, 0.0, %v578
      %vm605 = vcmask 1046528
      %v606 = vrot.slane %v524, 1
      %v607 = vrot.slane %v525, 1
      %v608 = vsel %vm605, %v606, %v607
      %v609 = vrot.slane %v526, 1
      %v610 = vrot.slane %v527, 1
      %v611 = vsel %vm605, %v609, %v610
      %v612 = vrot.slane %v528, 1
      %v613 = vrot.slane %v529, 1
      %v614 = vsel %vm605, %v612, %v613
      %v615 = vrot.slane %v530, 1
      %v616 = vrot.slane %v531, 1
      %v617 = vsel %vm605, %v615, %v616
      %v618 = vrot.slane %v532, 1
      %v619 = vrot.slane %v533, 1
      %v620 = vsel %vm605, %v618, %v619
      %v621 = vrot.slane %v534, 1
      %v622 = vrot.slane %v535, 1
      %v623 = vsel %vm605, %v621, %v622
      %v624 = vrot.slane %v536, 1
      %v625 = vrot.slane %v537, 1
      %v626 = vsel %vm605, %v624, %v625
      %v627 = vrot.slane %v538, 1
      %v628 = vrot.slane %v539, 1
      %v629 = vsel %vm605, %v627, %v628
      %v638 = vsel %vm605, %v607, 0.0
      %v639 = vsel %vm605, %v610, 0.0
      %v640 = vsel %vm605, %v613, 0.0
      %v641 = vsel %vm605, %v616, 0.0
      %v642 = vsel %vm605, %v619, 0.0
      %v643 = vsel %vm605, %v622, 0.0
      %v644 = vsel %vm605, %v625, 0.0
      %v645 = vsel %vm605, %v628, 0.0
      %646 = vrot.lane.b32.xlu0 %v524, 4
      %v647 = vpop.permute.xlu0 %646
      %648 = vrot.lane.b32.xlu0 %v525, 4
      %v649 = vpop.permute.xlu0 %648
      %650 = vrot.lane.b32.xlu0 %v526, 4
      %v651 = vpop.permute.xlu0 %650
      %652 = vrot.lane.b32.xlu0 %v527, 4
      %v653 = vpop.permute.xlu0 %652
      %654 = vrot.lane.b32.xlu0 %v528, 4
      %v655 = vpop.permute.xlu0 %654
      %656 = vrot.lane.b32.xlu0 %v529, 4
      %v657 = vpop.permute.xlu0 %656
      %658 = vrot.lane.b32.xlu0 %v530, 4
      %v659 = vpop.permute.xlu0 %658
      %660 = vrot.lane.b32.xlu0 %v531, 4
      %v661 = vpop.permute.xlu0 %660
      %662 = vrot.lane.b32.xlu0 %v532, 4
      %v663 = vpop.permute.xlu0 %662
      %664 = vrot.lane.b32.xlu0 %v533, 4
      %v665 = vpop.permute.xlu0 %664
      %666 = vrot.lane.b32.xlu0 %v534, 4
      %v667 = vpop.permute.xlu0 %666
      %668 = vrot.lane.b32.xlu0 %v535, 4
      %v669 = vpop.permute.xlu0 %668
      %670 = vrot.lane.b32.xlu0 %v536, 4
      %v671 = vpop.permute.xlu0 %670
      %672 = vrot.lane.b32.xlu0 %v537, 4
      %v673 = vpop.permute.xlu0 %672
      %674 = vrot.lane.b32.xlu0 %v538, 4
      %v675 = vpop.permute.xlu0 %674
      %676 = vrot.lane.b32.xlu0 %v539, 4
      %v677 = vpop.permute.xlu0 %676
      %702 = vrot.lane.b32.xlu0 %v608, 8
      %v703 = vpop.permute.xlu0 %702
      %704 = vrot.lane.b32.xlu0 %v638, 8
      %v705 = vpop.permute.xlu0 %704
      %706 = vrot.lane.b32.xlu0 %v611, 8
      %v707 = vpop.permute.xlu0 %706
      %708 = vrot.lane.b32.xlu0 %v639, 8
      %v709 = vpop.permute.xlu0 %708
      %710 = vrot.lane.b32.xlu0 %v614, 8
      %v711 = vpop.permute.xlu0 %710
      %712 = vrot.lane.b32.xlu0 %v640, 8
      %v713 = vpop.permute.xlu0 %712
      %714 = vrot.lane.b32.xlu0 %v617, 8
      %v715 = vpop.permute.xlu0 %714
      %716 = vrot.lane.b32.xlu0 %v641, 8
      %v717 = vpop.permute.xlu0 %716
      %718 = vrot.lane.b32.xlu0 %v620, 8
      %v719 = vpop.permute.xlu0 %718
      %720 = vrot.lane.b32.xlu0 %v642, 8
      %v721 = vpop.permute.xlu0 %720
      %722 = vrot.lane.b32.xlu0 %v623, 8
      %v723 = vpop.permute.xlu0 %722
      %724 = vrot.lane.b32.xlu0 %v643, 8
      %v725 = vpop.permute.xlu0 %724
      %726 = vrot.lane.b32.xlu0 %v626, 8
      %v727 = vpop.permute.xlu0 %726
      %728 = vrot.lane.b32.xlu0 %v644, 8
      %v729 = vpop.permute.xlu0 %728
      %730 = vrot.lane.b32.xlu0 %v629, 8
      %v731 = vpop.permute.xlu0 %730
      %732 = vrot.lane.b32.xlu0 %v645, 8
      %v733 = vpop.permute.xlu0 %732
      %v750 = vsel %vm474, %v597, %v647
      %v751 = vsel %vm474, %v559, %v649
      %v752 = vsel %vm474, %v598, %v651
      %v753 = vsel %vm474, %v562, %v653
      %v754 = vsel %vm474, %v599, %v655
      %v755 = vsel %vm474, %v565, %v657
      %v756 = vsel %vm474, %v600, %v659
      %v757 = vsel %vm474, %v568, %v661
      %v758 = vsel %vm474, %v601, %v663
      %v759 = vsel %vm474, %v571, %v665
      %v760 = vsel %vm474, %v602, %v667
      %v761 = vsel %vm474, %v574, %v669
      %v762 = vsel %vm474, %v603, %v671
      %v763 = vsel %vm474, %v577, %v673
      %v764 = vsel %vm474, %v604, %v675
      %v765 = vsel %vm474, %v580, %v677
      %vm766 = vcmask 64512
      %v767 = vsel %vm766, %v750, %v703
      %v768 = vsel %vm766, %v751, %v705
      %v769 = vsel %vm766, %v752, %v707
      %v770 = vsel %vm766, %v753, %v709
      %v771 = vsel %vm766, %v754, %v711
      %v772 = vsel %vm766, %v755, %v713
      %v773 = vsel %vm766, %v756, %v715
      %v774 = vsel %vm766, %v757, %v717
      %v775 = vsel %vm766, %v758, %v719
      %v776 = vsel %vm766, %v759, %v721
      %v777 = vsel %vm766, %v760, %v723
      %v778 = vsel %vm766, %v761, %v725
      %v779 = vsel %vm766, %v762, %v727
      %v780 = vsel %vm766, %v763, %v729
      %v781 = vsel %vm766, %v764, %v731
      %v782 = vsel %vm766, %v765, %v733
      %v783 = vld [vmem:[%s3] sm:$0xff]
      %v784 = vld [vmem:[%s3 + $0x8] sm:$0xf]
      %s785 = scalar_lea.vmem %s3, 16
      %v786 = vld [vmem:[%s785] sm:$0xff]
      %v787 = vld [vmem:[%s785 + $0x8] sm:$0xf]
      %vm788 = vcmask 97280
      %v790 = vsel %vm788, %v769, 0
      %v793 = vsel %vm788, %v770, 0
      %v796 = vsel %vm788, %v771, 0
      %v799 = vsel %vm788, %v772, 0
      %v802 = vsel %vm788, %v773, 0
      %v805 = vsel %vm788, %v774, 0
      %v808 = vsel %vm788, %v775, 0
      %v811 = vsel %vm788, %v776, 0
      %v814 = vsel %vm788, %v777, 0
      %v817 = vsel %vm788, %v778, 0
      %v820 = vsel %vm788, %v779, 0
      %v823 = vsel %vm788, %v780, 0
      %vm825 = vcmask 1043456
      %v827 = vsel %vm825, %v787, 0
      %829 = vmatpush.msra.mxu0 0.0
      %830 = vmatpush.msra.mxu0 0.0
      %831 = vmatpush.msra.mxu0 0.0
      %832 = vmatpush.msra.mxu0 0.0
      %833 = vmatpush.msra.mxu0 0.0
      %834 = vmatpush.msra.mxu0 0.0
      %835 = vmatpush.msra.mxu0 0.0
      %836 = vmatpush.msra.mxu0 0.0
      %837 = vmatpush.msra.mxu0 0.0
      %838 = vmatpush.msra.mxu0 0.0
      %839 = vmatpush.msra.mxu0 0.0
      %840 = vmatpush.msra.mxu0 0.0
      %841 = vmatpush.msra.mxu0 0.0
      %842 = vmatpush.msra.mxu0 0.0
      %843 = vmatpush.msra.mxu0 %v827
      %844 = vmatpush.msra.mxu0 %v786
      %845 = vmatmul.f32.gmra.mxu0 %v790
      %v846 = vpop.f32.mrf.mxu0
      %v847 = vadd.f32 0.0, %v846
      %848 = vmatmul.f32.gmra.mxu0 %v793
      %v849 = vpop.f32.mrf.mxu0
      %v850 = vadd.f32 0.0, %v849
      %851 = vmatmul.f32.gmra.mxu0 %v796
      %v852 = vpop.f32.mrf.mxu0
      %v853 = vadd.f32 0.0, %v852
      %854 = vmatmul.f32.gmra.mxu0 %v799
      %v855 = vpop.f32.mrf.mxu0
      %v856 = vadd.f32 0.0, %v855
      %857 = vmatmul.f32.gmra.mxu0 %v802
      %v858 = vpop.f32.mrf.mxu0
      %v859 = vadd.f32 0.0, %v858
      %860 = vmatmul.f32.gmra.mxu0 %v805
      %v861 = vpop.f32.mrf.mxu0
      %v862 = vadd.f32 0.0, %v861
      %863 = vmatmul.f32.gmra.mxu0 %v808
      %v864 = vpop.f32.mrf.mxu0
      %v865 = vadd.f32 0.0, %v864
      %866 = vmatmul.f32.gmra.mxu0 %v811
      %v867 = vpop.f32.mrf.mxu0
      %v868 = vadd.f32 0.0, %v867
      %869 = vmatmul.f32.gmra.mxu0 %v814
      %v870 = vpop.f32.mrf.mxu0
      %v871 = vadd.f32 0.0, %v870
      %872 = vmatmul.f32.gmra.mxu0 %v817
      %v873 = vpop.f32.mrf.mxu0
      %v874 = vadd.f32 0.0, %v873
      %875 = vmatmul.f32.gmra.mxu0 %v820
      %v876 = vpop.f32.mrf.mxu0
      %v877 = vadd.f32 0.0, %v876
      %878 = vmatmul.f32.gmra.mxu0 %v823
      %v879 = vpop.f32.mrf.mxu0
      %v880 = vadd.f32 0.0, %v879
      %881 = vdwg.mxu0
      %v883 = vsel %vm788, %v767, 0
      %v886 = vsel %vm788, %v768, 0
      %v889 = vsel %vm825, %v784, 0
      %891 = vmatpush.msra.mxu0 0.0
      %892 = vmatpush.msra.mxu0 0.0
      %893 = vmatpush.msra.mxu0 0.0
      %894 = vmatpush.msra.mxu0 0.0
      %895 = vmatpush.msra.mxu0 0.0
      %896 = vmatpush.msra.mxu0 0.0
      %897 = vmatpush.msra.mxu0 0.0
      %898 = vmatpush.msra.mxu0 0.0
      %899 = vmatpush.msra.mxu0 0.0
      %900 = vmatpush.msra.mxu0 0.0
      %901 = vmatpush.msra.mxu0 0.0
      %902 = vmatpush.msra.mxu0 0.0
      %903 = vmatpush.msra.mxu0 0.0
      %904 = vmatpush.msra.mxu0 0.0
      %905 = vmatpush.msra.mxu0 %v889
      %906 = vmatpush.msra.mxu0 %v783
      %907 = vmatmul.f32.gmra.mxu0 %v883
      %v908 = vpop.f32.mrf.mxu0
      %v909 = vadd.f32 %v847, %v908
      %910 = vmatmul.f32.gmra.mxu0 %v886
      %v911 = vpop.f32.mrf.mxu0
      %v912 = vadd.f32 %v850, %v911
      %913 = vmatmul.f32.gmra.mxu0 %v790
      %v914 = vpop.f32.mrf.mxu0
      %v915 = vadd.f32 %v853, %v914
      %916 = vmatmul.f32.gmra.mxu0 %v793
      %v917 = vpop.f32.mrf.mxu0
      %v918 = vadd.f32 %v856, %v917
      %919 = vmatmul.f32.gmra.mxu0 %v796
      %v920 = vpop.f32.mrf.mxu0
      %v921 = vadd.f32 %v859, %v920
      %922 = vmatmul.f32.gmra.mxu0 %v799
      %v923 = vpop.f32.mrf.mxu0
      %v924 = vadd.f32 %v862, %v923
      %925 = vmatmul.f32.gmra.mxu0 %v802
      %v926 = vpop.f32.mrf.mxu0
      %v927 = vadd.f32 %v865, %v926
      %928 = vmatmul.f32.gmra.mxu0 %v805
      %v929 = vpop.f32.mrf.mxu0
      %v930 = vadd.f32 %v868, %v929
      %931 = vmatmul.f32.gmra.mxu0 %v808
      %v932 = vpop.f32.mrf.mxu0
      %v933 = vadd.f32 %v871, %v932
      %934 = vmatmul.f32.gmra.mxu0 %v811
      %v935 = vpop.f32.mrf.mxu0
      %v936 = vadd.f32 %v874, %v935
      %937 = vmatmul.f32.gmra.mxu0 %v814
      %v938 = vpop.f32.mrf.mxu0
      %v939 = vadd.f32 %v877, %v938
      %940 = vmatmul.f32.gmra.mxu0 %v817
      %v941 = vpop.f32.mrf.mxu0
      %v942 = vadd.f32 %v880, %v941
      %943 = vdwg.mxu0
      %s944 = scalar_lea.vmem %s3, 32
      %v945 = vld [vmem:[%s944] sm:$0xff]
      %v946 = vld [vmem:[%s944 + $0x8] sm:$0xf]
      %v948 = vsel %vm788, %v781, 0
      %v951 = vsel %vm788, %v782, 0
      %v954 = vsel %vm825, %v946, 0
      %956 = vmatpush.msra.mxu0 0.0
      %957 = vmatpush.msra.mxu0 0.0
      %958 = vmatpush.msra.mxu0 0.0
      %959 = vmatpush.msra.mxu0 0.0
      %960 = vmatpush.msra.mxu0 0.0
      %961 = vmatpush.msra.mxu0 0.0
      %962 = vmatpush.msra.mxu0 0.0
      %963 = vmatpush.msra.mxu0 0.0
      %964 = vmatpush.msra.mxu0 0.0
      %965 = vmatpush.msra.mxu0 0.0
      %966 = vmatpush.msra.mxu0 0.0
      %967 = vmatpush.msra.mxu0 0.0
      %968 = vmatpush.msra.mxu0 0.0
      %969 = vmatpush.msra.mxu0 0.0
      %970 = vmatpush.msra.mxu0 %v954
      %971 = vmatpush.msra.mxu0 %v945
      %972 = vmatmul.f32.gmra.mxu0 %v796
      %v973 = vpop.f32.mrf.mxu0
      %v974 = vadd.f32 0.0, %v973
      %975 = vmatmul.f32.gmra.mxu0 %v799
      %v976 = vpop.f32.mrf.mxu0
      %v977 = vadd.f32 0.0, %v976
      %978 = vmatmul.f32.gmra.mxu0 %v802
      %v979 = vpop.f32.mrf.mxu0
      %v980 = vadd.f32 0.0, %v979
      %981 = vmatmul.f32.gmra.mxu0 %v805
      %v982 = vpop.f32.mrf.mxu0
      %v983 = vadd.f32 0.0, %v982
      %984 = vmatmul.f32.gmra.mxu0 %v808
      %v985 = vpop.f32.mrf.mxu0
      %v986 = vadd.f32 0.0, %v985
      %987 = vmatmul.f32.gmra.mxu0 %v811
      %v988 = vpop.f32.mrf.mxu0
      %v989 = vadd.f32 0.0, %v988
      %990 = vmatmul.f32.gmra.mxu0 %v814
      %v991 = vpop.f32.mrf.mxu0
      %v992 = vadd.f32 0.0, %v991
      %993 = vmatmul.f32.gmra.mxu0 %v817
      %v994 = vpop.f32.mrf.mxu0
      %v995 = vadd.f32 0.0, %v994
      %996 = vmatmul.f32.gmra.mxu0 %v820
      %v997 = vpop.f32.mrf.mxu0
      %v998 = vadd.f32 0.0, %v997
      %999 = vmatmul.f32.gmra.mxu0 %v823
      %v1000 = vpop.f32.mrf.mxu0
      %v1001 = vadd.f32 0.0, %v1000
      %1002 = vmatmul.f32.gmra.mxu0 %v948
      %v1003 = vpop.f32.mrf.mxu0
      %v1004 = vadd.f32 0.0, %v1003
      %1005 = vmatmul.f32.gmra.mxu0 %v951
      %v1006 = vpop.f32.mrf.mxu0
      %v1007 = vadd.f32 0.0, %v1006
      %1008 = vdwg.mxu0
      %v1009 = vadd.f32 %v909, %v974
      %v1010 = vadd.f32 %v912, %v977
      %v1011 = vadd.f32 %v915, %v980
      %v1012 = vadd.f32 %v918, %v983
      %v1013 = vadd.f32 %v921, %v986
      %v1014 = vadd.f32 %v924, %v989
      %v1015 = vadd.f32 %v927, %v992
      %v1016 = vadd.f32 %v930, %v995
      %v1017 = vadd.f32 %v933, %v998
      %v1018 = vadd.f32 %v936, %v1001
      %v1019 = vadd.f32 %v939, %v1004
      %v1020 = vadd.f32 %v942, %v1007
      %v1021 = vld [vmem:[%s4] sm:$0x1]
      %v1023 = vperm.slane %v1021, 0
      %v1025 = vadd.f32 %v1009, %v1023
      %v1026 = vadd.f32 %v1010, %v1023
      %v1027 = vadd.f32 %v1011, %v1023
      %v1028 = vadd.f32 %v1012, %v1023
      %v1029 = vadd.f32 %v1013, %v1023
      %v1030 = vadd.f32 %v1014, %v1023
      %v1031 = vadd.f32 %v1015, %v1023
      %v1032 = vadd.f32 %v1016, %v1023
      %v1033 = vadd.f32 %v1017, %v1023
      %v1034 = vadd.f32 %v1018, %v1023
      %v1035 = vadd.f32 %v1019, %v1023
      %v1036 = vadd.f32 %v1020, %v1023
      %v1037 = vmax.f32 %v1025, 0.0
      %v1038 = vmax.f32 %v1026, 0.0
      %v1039 = vmax.f32 %v1027, 0.0
      %v1040 = vmax.f32 %v1028, 0.0
      %v1041 = vmax.f32 %v1029, 0.0
      %v1042 = vmax.f32 %v1030, 0.0
      %v1043 = vmax.f32 %v1031, 0.0
      %v1044 = vmax.f32 %v1032, 0.0
      %v1045 = vmax.f32 %v1033, 0.0
      %v1046 = vmax.f32 %v1034, 0.0
      %v1047 = vmax.f32 %v1035, 0.0
      %v1048 = vmax.f32 %v1036, 0.0
      %1049 = vst.msk [vmem:[#allocation3] sm:$0xff] %vm474, %v1037
      %1050 = vst.msk [vmem:[#allocation3 + $0x8] sm:$0xff] %vm474, %v1038
      %1051 = vst.msk [vmem:[#allocation3 + $0x10] sm:$0xff] %vm474, %v1039
      %1052 = vst.msk [vmem:[#allocation3 + $0x18] sm:$0xff] %vm474, %v1040
      %1053 = vst.msk [vmem:[#allocation3 + $0x20] sm:$0xff] %vm474, %v1041
      %1054 = vst.msk [vmem:[#allocation3 + $0x28] sm:$0xff] %vm474, %v1042
      %1055 = vst.msk [vmem:[#allocation3 + $0x30] sm:$0xff] %vm474, %v1043
      %1056 = vst.msk [vmem:[#allocation3 + $0x38] sm:$0xff] %vm474, %v1044
      %1057 = vst.msk [vmem:[#allocation3 + $0x40] sm:$0xff] %vm474, %v1045
      %1058 = vst.msk [vmem:[#allocation3 + $0x48] sm:$0xff] %vm474, %v1046
      %1059 = vst.msk [vmem:[#allocation3 + $0x50] sm:$0xff] %vm474, %v1047
      %1060 = vst.msk [vmem:[#allocation3 + $0x58] sm:$0xff] %vm474, %v1048
      %p1061 = scmp.eq.s32.totalorder %s22, 0
      // Predicated region
      $region49: #{tpu_custom_call.1} parent=47 // pred_check
        %p1062 = pneg %p1061
      $region50: #{tpu_custom_call.1} parent=47 // pred_check_branch
        %1064 = sbr.rel (%p1062) target = $region52
      $region51: #{tpu_custom_call.1} parent=47 // pred_region
        %1065 = vst.msk [vmem:[#allocation3] sm:$0xff] %vm474, 0.0
        %1066 = vst.msk [vmem:[#allocation3 + $0x8] sm:$0xff] %vm474, 0.0
      $region52: #{tpu_custom_call.1} parent=47 // pred_fallthru
        _
      %p1067 = scmp.eq.s32.totalorder %s22, 3
      // Predicated region
      $region53: #{tpu_custom_call.1} parent=47 // pred_check
        %p1068 = pneg %p1067
      $region54: #{tpu_custom_call.1} parent=47 // pred_check_branch
        %1070 = sbr.rel (%p1068) target = $region56
      $region55: #{tpu_custom_call.1} parent=47 // pred_region
        %s1071 = scalar_lea.vmem [#allocation3], 80
        %1072 = vst.msk [vmem:[%s1071] sm:$0xff] %vm474, 0.0
        %1073 = vst.msk [vmem:[%s1071 + $0x8] sm:$0xff] %vm474, 0.0
      $region56: #{tpu_custom_call.1} parent=47 // pred_fallthru
        _
      %v1074 = vld [vmem:[#allocation3] sm:$0xff]
      %v1075 = vld [vmem:[#allocation3 + $0x8] sm:$0xff]
      %v1076 = vld [vmem:[#allocation3 + $0x10] sm:$0xff]
      %v1077 = vld [vmem:[#allocation3 + $0x18] sm:$0xff]
      %v1078 = vld [vmem:[#allocation3 + $0x20] sm:$0xff]
      %v1079 = vld [vmem:[#allocation3 + $0x28] sm:$0xff]
      %v1080 = vld [vmem:[#allocation3 + $0x30] sm:$0xff]
      %v1081 = vld [vmem:[#allocation3 + $0x38] sm:$0xff]
      %v1082 = vld [vmem:[#allocation3 + $0x40] sm:$0xff]
      %v1083 = vld [vmem:[#allocation3 + $0x48] sm:$0xff]
      %v1084 = vld [vmem:[#allocation3 + $0x50] sm:$0xff]
      %v1085 = vld [vmem:[#allocation3 + $0x58] sm:$0xff]
      %v1098 = vrot.slane %v1074, 7
      %v1099 = vrot.slane %v1075, 7
      %v1100 = vsel %vm556, %v1098, %v1099
      %v1101 = vrot.slane %v1076, 7
      %v1102 = vrot.slane %v1077, 7
      %v1103 = vsel %vm556, %v1101, %v1102
      %v1104 = vrot.slane %v1078, 7
      %v1105 = vrot.slane %v1079, 7
      %v1106 = vsel %vm556, %v1104, %v1105
      %v1107 = vrot.slane %v1080, 7
      %v1108 = vrot.slane %v1081, 7
      %v1109 = vsel %vm556, %v1107, %v1108
      %v1110 = vrot.slane %v1082, 7
      %v1111 = vrot.slane %v1083, 7
      %v1112 = vsel %vm556, %v1110, %v1111
      %v1113 = vrot.slane %v1084, 7
      %v1114 = vrot.slane %v1085, 7
      %v1115 = vsel %vm556, %v1113, %v1114
      %v1128 = vsel %vm556, 0.0, %v1098
      %v1129 = vsel %vm556, 0.0, %v1101
      %v1130 = vsel %vm556, 0.0, %v1104
      %v1131 = vsel %vm556, 0.0, %v1107
      %v1132 = vsel %vm556, 0.0, %v1110
      %v1133 = vsel %vm556, 0.0, %v1113
      %v1134 = vrot.slane %v1074, 1
      %v1135 = vrot.slane %v1075, 1
      %v1136 = vsel %vm605, %v1134, %v1135
      %v1137 = vrot.slane %v1076, 1
      %v1138 = vrot.slane %v1077, 1
      %v1139 = vsel %vm605, %v1137, %v1138
      %v1140 = vrot.slane %v1078, 1
      %v1141 = vrot.slane %v1079, 1
      %v1142 = vsel %vm605, %v1140, %v1141
      %v1143 = vrot.slane %v1080, 1
      %v1144 = vrot.slane %v1081, 1
      %v1145 = vsel %vm605, %v1143, %v1144
      %v1146 = vrot.slane %v1082, 1
      %v1147 = vrot.slane %v1083, 1
      %v1148 = vsel %vm605, %v1146, %v1147
      %v1149 = vrot.slane %v1084, 1
      %v1150 = vrot.slane %v1085, 1
      %v1151 = vsel %vm605, %v1149, %v1150
      %v1158 = vsel %vm605, %v1135, 0.0
      %v1159 = vsel %vm605, %v1138, 0.0
      %v1160 = vsel %vm605, %v1141, 0.0
      %v1161 = vsel %vm605, %v1144, 0.0
      %v1162 = vsel %vm605, %v1147, 0.0
      %v1163 = vsel %vm605, %v1150, 0.0
      %1164 = vrot.lane.b32.xlu0 %v1074, 4
      %v1165 = vpop.permute.xlu0 %1164
      %1166 = vrot.lane.b32.xlu0 %v1075, 4
      %v1167 = vpop.permute.xlu0 %1166
      %1168 = vrot.lane.b32.xlu0 %v1076, 4
      %v1169 = vpop.permute.xlu0 %1168
      %1170 = vrot.lane.b32.xlu0 %v1077, 4
      %v1171 = vpop.permute.xlu0 %1170
      %1172 = vrot.lane.b32.xlu0 %v1078, 4
      %v1173 = vpop.permute.xlu0 %1172
      %1174 = vrot.lane.b32.xlu0 %v1079, 4
      %v1175 = vpop.permute.xlu0 %1174
      %1176 = vrot.lane.b32.xlu0 %v1080, 4
      %v1177 = vpop.permute.xlu0 %1176
      %1178 = vrot.lane.b32.xlu0 %v1081, 4
      %v1179 = vpop.permute.xlu0 %1178
      %1180 = vrot.lane.b32.xlu0 %v1082, 4
      %v1181 = vpop.permute.xlu0 %1180
      %1182 = vrot.lane.b32.xlu0 %v1083, 4
      %v1183 = vpop.permute.xlu0 %1182
      %1184 = vrot.lane.b32.xlu0 %v1084, 4
      %v1185 = vpop.permute.xlu0 %1184
      %1186 = vrot.lane.b32.xlu0 %v1085, 4
      %v1187 = vpop.permute.xlu0 %1186
      %1206 = vrot.lane.b32.xlu0 %v1136, 8
      %v1207 = vpop.permute.xlu0 %1206
      %1208 = vrot.lane.b32.xlu0 %v1158, 8
      %v1209 = vpop.permute.xlu0 %1208
      %1210 = vrot.lane.b32.xlu0 %v1139, 8
      %v1211 = vpop.permute.xlu0 %1210
      %1212 = vrot.lane.b32.xlu0 %v1159, 8
      %v1213 = vpop.permute.xlu0 %1212
      %1214 = vrot.lane.b32.xlu0 %v1142, 8
      %v1215 = vpop.permute.xlu0 %1214
      %1216 = vrot.lane.b32.xlu0 %v1160, 8
      %v1217 = vpop.permute.xlu0 %1216
      %1218 = vrot.lane.b32.xlu0 %v1145, 8
      %v1219 = vpop.permute.xlu0 %1218
      %1220 = vrot.lane.b32.xlu0 %v1161, 8
      %v1221 = vpop.permute.xlu0 %1220
      %1222 = vrot.lane.b32.xlu0 %v1148, 8
      %v1223 = vpop.permute.xlu0 %1222
      %1224 = vrot.lane.b32.xlu0 %v1162, 8
      %v1225 = vpop.permute.xlu0 %1224
      %1226 = vrot.lane.b32.xlu0 %v1151, 8
      %v1227 = vpop.permute.xlu0 %1226
      %1228 = vrot.lane.b32.xlu0 %v1163, 8
      %v1229 = vpop.permute.xlu0 %1228
      %v1242 = vsel %vm474, %v1128, %v1165
      %v1243 = vsel %vm474, %v1100, %v1167
      %v1244 = vsel %vm474, %v1129, %v1169
      %v1245 = vsel %vm474, %v1103, %v1171
      %v1246 = vsel %vm474, %v1130, %v1173
      %v1247 = vsel %vm474, %v1106, %v1175
      %v1248 = vsel %vm474, %v1131, %v1177
      %v1249 = vsel %vm474, %v1109, %v1179
      %v1250 = vsel %vm474, %v1132, %v1181
      %v1251 = vsel %vm474, %v1112, %v1183
      %v1252 = vsel %vm474, %v1133, %v1185
      %v1253 = vsel %vm474, %v1115, %v1187
      %v1254 = vsel %vm766, %v1242, %v1207
      %v1255 = vsel %vm766, %v1243, %v1209
      %v1256 = vsel %vm766, %v1244, %v1211
      %v1257 = vsel %vm766, %v1245, %v1213
      %v1258 = vsel %vm766, %v1246, %v1215
      %v1259 = vsel %vm766, %v1247, %v1217
      %v1260 = vsel %vm766, %v1248, %v1219
      %v1261 = vsel %vm766, %v1249, %v1221
      %v1262 = vsel %vm766, %v1250, %v1223
      %v1263 = vsel %vm766, %v1251, %v1225
      %v1264 = vsel %vm766, %v1252, %v1227
      %v1265 = vsel %vm766, %v1253, %v1229
      %v1266 = vld [vmem:[%s5] sm:$0xff]
      %v1267 = vld [vmem:[%s5 + $0x8] sm:$0xf]
      %s1268 = scalar_lea.vmem %s5, 16
      %v1269 = vld [vmem:[%s1268] sm:$0xff]
      %v1270 = vld [vmem:[%s1268 + $0x8] sm:$0xf]
      %v1272 = vsel %vm788, %v1256, 0
      %v1275 = vsel %vm788, %v1257, 0
      %v1278 = vsel %vm788, %v1258, 0
      %v1281 = vsel %vm788, %v1259, 0
      %v1284 = vsel %vm788, %v1260, 0
      %v1287 = vsel %vm788, %v1261, 0
      %v1290 = vsel %vm788, %v1262, 0
      %v1293 = vsel %vm788, %v1263, 0
      %v1296 = vsel %vm825, %v1270, 0
      %1298 = vmatpush.msra.mxu0 0.0
      %1299 = vmatpush.msra.mxu0 0.0
      %1300 = vmatpush.msra.mxu0 0.0
      %1301 = vmatpush.msra.mxu0 0.0
      %1302 = vmatpush.msra.mxu0 0.0
      %1303 = vmatpush.msra.mxu0 0.0
      %1304 = vmatpush.msra.mxu0 0.0
      %1305 = vmatpush.msra.mxu0 0.0
      %1306 = vmatpush.msra.mxu0 0.0
      %1307 = vmatpush.msra.mxu0 0.0
      %1308 = vmatpush.msra.mxu0 0.0
      %1309 = vmatpush.msra.mxu0 0.0
      %1310 = vmatpush.msra.mxu0 0.0
      %1311 = vmatpush.msra.mxu0 0.0
      %1312 = vmatpush.msra.mxu0 %v1296
      %1313 = vmatpush.msra.mxu0 %v1269
      %1314 = vmatmul.f32.gmra.mxu0 %v1272
      %v1315 = vpop.f32.mrf.mxu0
      %v1316 = vadd.f32 0.0, %v1315
      %1317 = vmatmul.f32.gmra.mxu0 %v1275
      %v1318 = vpop.f32.mrf.mxu0
      %v1319 = vadd.f32 0.0, %v1318
      %1320 = vmatmul.f32.gmra.mxu0 %v1278
      %v1321 = vpop.f32.mrf.mxu0
      %v1322 = vadd.f32 0.0, %v1321
      %1323 = vmatmul.f32.gmra.mxu0 %v1281
      %v1324 = vpop.f32.mrf.mxu0
      %v1325 = vadd.f32 0.0, %v1324
      %1326 = vmatmul.f32.gmra.mxu0 %v1284
      %v1327 = vpop.f32.mrf.mxu0
      %v1328 = vadd.f32 0.0, %v1327
      %1329 = vmatmul.f32.gmra.mxu0 %v1287
      %v1330 = vpop.f32.mrf.mxu0
      %v1331 = vadd.f32 0.0, %v1330
      %1332 = vmatmul.f32.gmra.mxu0 %v1290
      %v1333 = vpop.f32.mrf.mxu0
      %v1334 = vadd.f32 0.0, %v1333
      %1335 = vmatmul.f32.gmra.mxu0 %v1293
      %v1336 = vpop.f32.mrf.mxu0
      %v1337 = vadd.f32 0.0, %v1336
      %1338 = vdwg.mxu0
      %v1340 = vsel %vm788, %v1254, 0
      %v1343 = vsel %vm788, %v1255, 0
      %v1346 = vsel %vm825, %v1267, 0
      %1348 = vmatpush.msra.mxu0 0.0
      %1349 = vmatpush.msra.mxu0 0.0
      %1350 = vmatpush.msra.mxu0 0.0
      %1351 = vmatpush.msra.mxu0 0.0
      %1352 = vmatpush.msra.mxu0 0.0
      %1353 = vmatpush.msra.mxu0 0.0
      %1354 = vmatpush.msra.mxu0 0.0
      %1355 = vmatpush.msra.mxu0 0.0
      %1356 = vmatpush.msra.mxu0 0.0
      %1357 = vmatpush.msra.mxu0 0.0
      %1358 = vmatpush.msra.mxu0 0.0
      %1359 = vmatpush.msra.mxu0 0.0
      %1360 = vmatpush.msra.mxu0 0.0
      %1361 = vmatpush.msra.mxu0 0.0
      %1362 = vmatpush.msra.mxu0 %v1346
      %1363 = vmatpush.msra.mxu0 %v1266
      %1364 = vmatmul.f32.gmra.mxu0 %v1340
      %v1365 = vpop.f32.mrf.mxu0
      %v1366 = vadd.f32 %v1316, %v1365
      %1367 = vmatmul.f32.gmra.mxu0 %v1343
      %v1368 = vpop.f32.mrf.mxu0
      %v1369 = vadd.f32 %v1319, %v1368
      %1370 = vmatmul.f32.gmra.mxu0 %v1272
      %v1371 = vpop.f32.mrf.mxu0
      %v1372 = vadd.f32 %v1322, %v1371
      %1373 = vmatmul.f32.gmra.mxu0 %v1275
      %v1374 = vpop.f32.mrf.mxu0
      %v1375 = vadd.f32 %v1325, %v1374
      %1376 = vmatmul.f32.gmra.mxu0 %v1278
      %v1377 = vpop.f32.mrf.mxu0
      %v1378 = vadd.f32 %v1328, %v1377
      %1379 = vmatmul.f32.gmra.mxu0 %v1281
      %v1380 = vpop.f32.mrf.mxu0
      %v1381 = vadd.f32 %v1331, %v1380
      %1382 = vmatmul.f32.gmra.mxu0 %v1284
      %v1383 = vpop.f32.mrf.mxu0
      %v1384 = vadd.f32 %v1334, %v1383
      %1385 = vmatmul.f32.gmra.mxu0 %v1287
      %v1386 = vpop.f32.mrf.mxu0
      %v1387 = vadd.f32 %v1337, %v1386
      %1388 = vdwg.mxu0
      %s1389 = scalar_lea.vmem %s5, 32
      %v1390 = vld [vmem:[%s1389] sm:$0xff]
      %v1391 = vld [vmem:[%s1389 + $0x8] sm:$0xf]
      %v1393 = vsel %vm788, %v1264, 0
      %v1396 = vsel %vm788, %v1265, 0
      %v1399 = vsel %vm825, %v1391, 0
      %1401 = vmatpush.msra.mxu0 0.0
      %1402 = vmatpush.msra.mxu0 0.0
      %1403 = vmatpush.msra.mxu0 0.0
      %1404 = vmatpush.msra.mxu0 0.0
      %1405 = vmatpush.msra.mxu0 0.0
      %1406 = vmatpush.msra.mxu0 0.0
      %1407 = vmatpush.msra.mxu0 0.0
      %1408 = vmatpush.msra.mxu0 0.0
      %1409 = vmatpush.msra.mxu0 0.0
      %1410 = vmatpush.msra.mxu0 0.0
      %1411 = vmatpush.msra.mxu0 0.0
      %1412 = vmatpush.msra.mxu0 0.0
      %1413 = vmatpush.msra.mxu0 0.0
      %1414 = vmatpush.msra.mxu0 0.0
      %1415 = vmatpush.msra.mxu0 %v1399
      %1416 = vmatpush.msra.mxu0 %v1390
      %1417 = vmatmul.f32.gmra.mxu0 %v1278
      %v1418 = vpop.f32.mrf.mxu0
      %v1419 = vadd.f32 0.0, %v1418
      %1420 = vmatmul.f32.gmra.mxu0 %v1281
      %v1421 = vpop.f32.mrf.mxu0
      %v1422 = vadd.f32 0.0, %v1421
      %1423 = vmatmul.f32.gmra.mxu0 %v1284
      %v1424 = vpop.f32.mrf.mxu0
      %v1425 = vadd.f32 0.0, %v1424
      %1426 = vmatmul.f32.gmra.mxu0 %v1287
      %v1427 = vpop.f32.mrf.mxu0
      %v1428 = vadd.f32 0.0, %v1427
      %1429 = vmatmul.f32.gmra.mxu0 %v1290
      %v1430 = vpop.f32.mrf.mxu0
      %v1431 = vadd.f32 0.0, %v1430
      %1432 = vmatmul.f32.gmra.mxu0 %v1293
      %v1433 = vpop.f32.mrf.mxu0
      %v1434 = vadd.f32 0.0, %v1433
      %1435 = vmatmul.f32.gmra.mxu0 %v1393
      %v1436 = vpop.f32.mrf.mxu0
      %v1437 = vadd.f32 0.0, %v1436
      %1438 = vmatmul.f32.gmra.mxu0 %v1396
      %v1439 = vpop.f32.mrf.mxu0
      %v1440 = vadd.f32 0.0, %v1439
      %1441 = vdwg.mxu0
      %v1442 = vadd.f32 %v1366, %v1419
      %v1443 = vadd.f32 %v1369, %v1422
      %v1444 = vadd.f32 %v1372, %v1425
      %v1445 = vadd.f32 %v1375, %v1428
      %v1446 = vadd.f32 %v1378, %v1431
      %v1447 = vadd.f32 %v1381, %v1434
      %v1448 = vadd.f32 %v1384, %v1437
      %v1449 = vadd.f32 %v1387, %v1440
      %v1450 = vld [vmem:[%s6] sm:$0x1]
      %v1452 = vperm.slane %v1450, 0
      %v1454 = vadd.f32 %v1442, %v1452
      %v1455 = vadd.f32 %v1443, %v1452
      %v1456 = vadd.f32 %v1444, %v1452
      %v1457 = vadd.f32 %v1445, %v1452
      %v1458 = vadd.f32 %v1446, %v1452
      %v1459 = vadd.f32 %v1447, %v1452
      %v1460 = vadd.f32 %v1448, %v1452
      %v1461 = vadd.f32 %v1449, %v1452
      %v1462 = vadd.f32 %v1454, %v457
      %v1463 = vadd.f32 %v1455, %v458
      %v1464 = vadd.f32 %v1456, %v459
      %v1465 = vadd.f32 %v1457, %v460
      %v1466 = vadd.f32 %v1458, %v461
      %v1467 = vadd.f32 %v1459, %v462
      %v1468 = vadd.f32 %v1460, %v463
      %v1469 = vadd.f32 %v1461, %v464
      %1470 = vst.msk [vmem:[%s455] sm:$0xff] %vm474, %v1462
      %1471 = vst.msk [vmem:[%s455 + $0x8] sm:$0xff] %vm474, %v1463
      %1472 = vst.msk [vmem:[%s455 + $0x10] sm:$0xff] %vm474, %v1464
      %1473 = vst.msk [vmem:[%s455 + $0x18] sm:$0xff] %vm474, %v1465
      %1474 = vst.msk [vmem:[%s455 + $0x20] sm:$0xff] %vm474, %v1466
      %1475 = vst.msk [vmem:[%s455 + $0x28] sm:$0xff] %vm474, %v1467
      %1476 = vst.msk [vmem:[%s455 + $0x30] sm:$0xff] %vm474, %v1468
      %1477 = vst.msk [vmem:[%s455 + $0x38] sm:$0xff] %vm474, %v1469
      %s1478 = smul.u32 4, %s22
      %p1479 = scmp.lt.s32.totalorder %s23, 1
      %s1480 = scalar_select %p1479, %s23, 1
      %p1481 = scmp.lt.s32.totalorder %s1478, 15
      %s1482 = scalar_select %p1481, %s1478, 15
      %s1483 = smul.addr %s1482, 2
      %s1484 = smul.addr %s1480, 32
      %s1485 = sadd.s32 %s1483, %s1484
      %s1486 = smul.addr %s1485, 8
      %s1487 = scalar_lea.vmem %s7, %s1486
      // Predicated region
      $region57: #{tpu_custom_call.1} parent=47 // pred_check
        %p1488 = pneg %p234
      $region58: #{tpu_custom_call.1} parent=47 // pred_check_branch
        %1490 = sbr.rel (%p1488) target = $region60
      $region59: #{tpu_custom_call.1} parent=47 // pred_region
        %s1491 = smul.u32 4, %s22
      $region60: #{tpu_custom_call.1} parent=47 // pred_fallthru
        _
    $region48: #{tpu_custom_call.1} parent=5 // pred_fallthru
      _
    %p1492 = scmp.le.s32.totalorder 2, %s13
    // Predicated region
    $region61: #{tpu_custom_call.1} parent=5 // pred_check
      %p1493 = pneg %p1492
    $region62: #{tpu_custom_call.1} parent=5 // pred_check_branch
      %1495 = sbr.rel (%p1493) target = $region64
    $region63: #{tpu_custom_call.1} parent=5 // pred_region
      %s1496 = ssub.s32 %s13, 2
      // Predicated region
      $region65: #{tpu_custom_call.1} parent=63 // pred_check
        %p1497 = pneg %p240
      $region66: #{tpu_custom_call.1} parent=63 // pred_check_branch
        %1499 = sbr.rel (%p1497) target = $region68
      $region67: #{tpu_custom_call.1} parent=63 // pred_region
        %s1500 = smul.u32 4, %s24
        %p1501 = scmp.lt.s32.totalorder %s25, 1
        %s1502 = scalar_select %p1501, %s25, 1
        %p1503 = scmp.lt.s32.totalorder %s1500, 15
        %s1504 = scalar_select %p1503, %s1500, 15
        %s1505 = smul.addr %s1504, 2
        %s1506 = smul.addr %s1502, 32
        %s1507 = sadd.s32 %s1505, %s1506
        %s1508 = smul.addr %s1507, 8
        %s1509 = scalar_lea.vmem %s7, %s1508
      $region68: #{tpu_custom_call.1} parent=63 // pred_fallthru
        _
    $region64: #{tpu_custom_call.1} parent=5 // pred_fallthru
      _
  $region6: #{tpu_custom_call.1} parent=0 // loop_footer
    %s17 = sadd.s32 1, %s13
  $region7: #{tpu_custom_call.1} parent=0 // loop_footer_branch
    %12 = sbr.rel target = $region3
  $region8: #{tpu_custom_call.1} parent=0 // loop_exit
    _

</llo_original>
